<compile_context>
chip_gen: v6e
topology: v6e:2x2x1
jax: 0.10.0
libtpu: 0.0.40
codegen_flags: <defaults>
</compile_context>

<pallas_src>
import functools

import jax
import jax.numpy as jnp
from jax import lax
from jax.experimental import pallas as pl
from jax.experimental.pallas import tpu as pltpu


def _round_up(x, m):
    return (x + m - 1) // m * m


def _vmem_limit_bytes():
    """~3/4 of this chip's VMEM: ~48 MiB on v7x (64 MiB), ~96 MiB on v5e/v6e (128 MiB)."""
    try:
        cap = int(pltpu.get_tpu_info().vmem_capacity_bytes)
    except Exception:
        cap = 64 * 1024 * 1024          # conservative (v7x-sized) fallback
    return max(32 * 1024 * 1024, cap * 3 // 4)


def _pick_rows_per_strip(Ho, W, C1p, C2p, in_item, out_item, budget):
    """Largest output-row strip height dividing Ho whose per-step footprint fits budget."""
    Wo = W // 2
    for hos in range(Ho, 1, -1):
        if Ho % hos:
            continue
        hs = 2 * hos
        step = ((hs + 2) * (W + 2) * C1p * in_item * 2     # halo strip (double-buffered)
                + hos * Wo * C2p * 4 * 2                    # f32 residual block
                + hos * Wo * C2p * out_item * 2             # output block
                + 9 * C1p * C2p * in_item                   # weights (single-buffered)
                + 4 * hs * W * C2p * 4                      # conv/GN/pool f32 temporaries
                + hos * W * C2p * 4)                        # W-pool staging scratch
        if step <= budget:
            return hos
    return min(Ho, 2) if Ho >= 2 else 1


def fused_conv_gn_pool_residual(x1, x2, w, b, gamma, beta, *, groups=16, eps=1e-5,
                                input_dtype=jnp.bfloat16, out_dtype=jnp.float32,
                                rows_per_strip=None, return_nchw=True):
    """Conv2d(3x3,s1,p1)+bias -> GroupNorm(groups) -> MaxPool2d(3,s2,p1) -> ReLU -> +x2.

    x1: (B, C1, H, W) NCHW; x2: (B, C2, H//2, W//2) NCHW; w: (C2, C1, 3, 3) OIHW.
    """
    f32 = jnp.float32
    B, C1, H, W = x1.shape
    C2 = w.shape[0]
    assert H % 2 == 0 and W % 2 == 0, "kernel assumes even spatial dims"
    assert W % 8 == 0, "W must be a multiple of 8 (layout-preserving reshapes)"
    assert C2 % groups == 0
    Ho, Wo = H // 2, W // 2
    G = groups
    Cg = C2 // G

    C2p = _round_up(C2, 128)            # lane-dense output channels (unmasked vst/vld)
    C1p = _round_up(C1, 16)             # contraction depth (bf16 sublane packing)
    in_item = jnp.dtype(input_dtype).itemsize
    out_item = jnp.dtype(out_dtype).itemsize

    vmem_limit = _vmem_limit_bytes()
    if rows_per_strip is None:
        rows_per_strip = _pick_rows_per_strip(Ho, W, C1p, C2p, in_item, out_item,
                                              budget=(2 * vmem_limit) // 5)
    Hos = rows_per_strip                # pooled output rows per strip
    assert Ho % Hos == 0
    S = Ho // Hos                       # strips per image
    Hs = 2 * Hos                        # conv rows per strip

    # ---------------- layout glue: transforms & parameter packing (plain JAX) ----------
    # NHWC, zero ring for the 3x3 conv, channels padded to C1p.
    x1n = jnp.transpose(x1, (0, 2, 3, 1)).astype(input_dtype)
    x1pad = jnp.pad(x1n, ((0, 0), (1, 1), (1, 1), (0, C1p - C1)))   # (B, H+2, W+2, C1p)
    # Overlapping halo strips (2-row overlap between consecutive strips).
    # TODO(synk): replace this small (Hs+2)/Hs HBM duplication with a manual
    # pltpu.make_async_copy halo window from the un-duplicated padded array.
    x1s = jnp.stack([x1pad[:, si * Hs: si * Hs + Hs + 2] for si in range(S)], axis=1)
    x1s = x1s.reshape(B * S, Hs + 2, W + 2, C1p)

    # Weights packed to (9, C1p, C2p), tap order t = kh*3 + kw; zero padded.
    wt = jnp.transpose(w, (2, 3, 1, 0)).reshape(9, C1, C2).astype(input_dtype)
    wt = jnp.pad(wt, ((0, 0), (0, C1p - C1), (0, C2p - C2)))

    # Bias folded into the GN shift: with b' = b - group_mean(b), GroupNorm stats of
    # (conv + b') match those of (conv + b) exactly, so the kernel never adds the bias
    # to the big slab -- it only adjusts the per-channel sums and the final shift.
    bg = b.reshape(G, Cg).mean(axis=1)
    bprime = (b - jnp.repeat(bg, Cg)).astype(f32)
    bp_p = jnp.pad(bprime, (0, C2p - C2)).reshape(1, C2p)
    gam_p = jnp.pad(gamma.astype(f32), (0, C2p - C2)).reshape(1, C2p)
    bet_p = jnp.pad(beta.astype(f32), (0, C2p - C2)).reshape(1, C2p)

    # Group-membership matrices: GN stats reduce to two tiny matmuls.  Padded channels
    # get zero rows/cols so they never pollute the statistics.
    ch = jnp.arange(C2p)
    member = (((ch[:, None] // Cg) == jnp.arange(G)[None, :]) & (ch[:, None] < C2))
    member = member.astype(f32)                              # (C2p, G)
    gm = member / float(Cg * H * W)                          # channel sums -> group mean
    gmt = member.T                                           # (G, C2p) broadcast back

    # Residual stays f32 (it adds unscaled into the output); channel-padded NHWC.
    x2n = jnp.transpose(x2, (0, 2, 3, 1)).astype(f32)
    x2n = jnp.pad(x2n, ((0, 0), (0, 0), (0, 0), (0, C2p - C2)))

    neg_inf = float("-inf")

    # ---------------- kernel ----------------
    def kernel(x1s_ref, w_ref, bp_ref, gam_ref, bet_ref, gm_ref, gmt_ref, x2_ref,
               o_ref, sum_ref, sumsq_ref, scale_ref, shift_ref, carry_ref, wbuf_ref):
        p = pl.program_id(1)             # 0 = stats pass, 1 = apply pass
        s = pl.program_id(2)             # strip index
        n_s = pl.num_programs(2)

        # Conv2d 3x3 (stride 1, pad 1) for this strip: in-kernel im2col.  The 9 shifted
        # taps are sliced straight out of the VMEM halo block; nine MXU matmuls of
        # K = C1p accumulate in f32 (on v7x the MRB accumulates in place for free).
        # TODO(synk): for very large C1, stash pass-0 conv output in an HBM aux output
        # instead of recomputing it in pass 1.
        acc = jnp.zeros((Hs * W, C2p), jnp.float32)
        for t in range(9):
            kh, kw = divmod(t, 3)
            tap = x1s_ref[0, kh:kh + Hs, kw:kw + W, :].reshape(Hs * W, C1p)
            acc = acc + jnp.dot(tap, w_ref[t], preferred_element_type=jnp.float32)

        # ---- pass 0: accumulate GroupNorm statistics across strips --------------------
        @pl.when(p == 0)
        def _stats():
            @pl.when(s == 0)
            def _init():
                sum_ref[...] = jnp.zeros_like(sum_ref)
                sumsq_ref[...] = jnp.zeros_like(sumsq_ref)

            sum_ref[...] += jnp.sum(acc, axis=0, keepdims=True)
            sumsq_ref[...] += jnp.sum(acc * acc, axis=0, keepdims=True)

            @pl.when(s == n_s - 1)
            def _finalize():
                n = float(H * W)
                bp = bp_ref[...]
                # Per-channel sums of z = conv + b' (bias adjustment done on the tiny
                # (1, C2p) rows, never on the slab).  f32 accumulation throughout.
                s1 = sum_ref[...] + n * bp
                s2 = sumsq_ref[...] + 2.0 * bp * sum_ref[...] + n * bp * bp
                mu_c = jnp.dot(jnp.dot(s1, gm_ref[...],
                                       preferred_element_type=jnp.float32),
                               gmt_ref[...], preferred_element_type=jnp.float32)
                ex2_c = jnp.dot(jnp.dot(s2, gm_ref[...],
                                        preferred_element_type=jnp.float32),
                                gmt_ref[...], preferred_element_type=jnp.float32)
                var_c = jnp.maximum(ex2_c - mu_c * mu_c, 0.0)
                inv = lax.rsqrt(var_c + eps)
                scale = gam_ref[...] * inv
                scale_ref[...] = scale
                shift_ref[...] = bet_ref[...] + (bp - mu_c) * scale

        # ---- pass 1: fused GN affine, MaxPool2d(3,2,1), ReLU, residual add ------------
        @pl.when(p == 1)
        def _apply():
            @pl.when(s == 0)
            def _reset_carry():
                carry_ref[...] = jnp.full((1, W, C2p), neg_inf, jnp.float32)

            prev = carry_ref[...]                       # GN row 2*ho0-1 (prev strip / -inf)
            y = acc * scale_ref[...] + shift_ref[...]   # one fused scale+shift pass
            y2 = y.reshape(Hos, 2 * W, C2p)             # layout-preserving (2W % 8 == 0)
            ev = y2[:, :W, :]                           # conv rows 2*ho
            od = y2[:, W:, :]                           # conv rows 2*ho + 1
            carry_ref[...] = od[Hos - 1:Hos]            # last GN row -> next strip's halo
            if Hos > 1:
                up = jnp.concatenate([prev, od[:Hos - 1]], axis=0)   # conv rows 2*ho - 1
            else:
                up = prev
            hm = jnp.maximum(jnp.maximum(ev, od), up)   # (Hos, W, C2p) H-pooled rows

            # W direction: taps {2wo-1, 2wo, 2wo+1} built with sublane rolls (XLU, free
            # slot), then one strided read of the even columns from a strip-sized scratch.
            col = lax.broadcasted_iota(jnp.int32, (Hos, W, C2p), 1)
            left = jnp.where(col == 0, neg_inf, pltpu.roll(hm, shift=1, axis=1))
            right = pltpu.roll(hm, shift=W - 1, axis=1)     # column w+1 (wrap unused)
            wbuf_ref[...] = jnp.maximum(jnp.maximum(left, hm), right)
            pooled = wbuf_ref[:, pl.ds(0, Wo, 2), :]        # even columns -> (Hos, Wo, C2p)

            # ReLU + residual; C2p is a multiple of 128 -> full-lane unmasked store.
            o_ref[0] = (jnp.maximum(pooled, 0.0) + x2_ref[0]).astype(o_ref.dtype)

    flops = 2 * 2 * B * H * W * 9 * C1p * C2p            # conv runs in both passes
    bytes_accessed = (2 * B * S * (Hs + 2) * (W + 2) * C1p * in_item   # halo strips, 2 passes
                      + 9 * C1p * C2p * in_item                        # weights
                      + B * Ho * Wo * C2p * 4                          # residual (f32)
                      + B * Ho * Wo * C2p * out_item)                  # output

    const = dict(pipeline_mode=pl.Buffered(1))            # grid-invariant operands

    out = pl.pallas_call(
        kernel,
        out_shape=jax.ShapeDtypeStruct((B, Ho, Wo, C2p), out_dtype),
        grid_spec=pltpu.PrefetchScalarGridSpec(
            num_scalar_prefetch=0,
            grid=(B, 2, S),
            in_specs=[
                # Halo strip; keep the default 2-deep pipelining (bump to pl.Buffered(3)
                # on v5e if the strip DMA is still exposed after in-kernel im2col).
                pl.BlockSpec((1, Hs + 2, W + 2, C1p),
                             lambda b, p, s: (b * S + s, 0, 0, 0)),
                pl.BlockSpec((9, C1p, C2p), lambda b, p, s: (0, 0, 0), **const),
                pl.BlockSpec((1, C2p), lambda b, p, s: (0, 0), **const),
                pl.BlockSpec((1, C2p), lambda b, p, s: (0, 0), **const),
                pl.BlockSpec((1, C2p), lambda b, p, s: (0, 0), **const),
                pl.BlockSpec((C2p, G), lambda b, p, s: (0, 0), **const),
                pl.BlockSpec((G, C2p), lambda b, p, s: (0, 0), **const),
                # Residual / output: pinned to block (b, 0) during the stats pass so no
                # partially-written block is ever flushed to HBM.
                pl.BlockSpec((1, Hos, Wo, C2p), lambda b, p, s: (b, s * p, 0, 0)),
            ],
            out_specs=pl.BlockSpec((1, Hos, Wo, C2p), lambda b, p, s: (b, s * p, 0, 0)),
            scratch_shapes=[
                pltpu.VMEM((1, C2p), jnp.float32),        # per-channel sum
                pltpu.VMEM((1, C2p), jnp.float32),        # per-channel sum of squares
                pltpu.VMEM((1, C2p), jnp.float32),        # fused GN scale
                pltpu.VMEM((1, C2p), jnp.float32),        # fused GN shift
                pltpu.VMEM((1, W, C2p), jnp.float32),     # pool halo-row carry
                pltpu.VMEM((Hos, W, C2p), jnp.float32),   # W-pool staging (strip-sized)
            ],
        ),
        compiler_params=pltpu.CompilerParams(
            dimension_semantics=("parallel", "arbitrary", "arbitrary"),
            vmem_limit_bytes=vmem_limit,
        ),
        cost_estimate=pl.CostEstimate(flops=flops, transcendentals=0,
                                      bytes_accessed=bytes_accessed),
    )(x1s, wt, bp_p, gam_p, bet_p, gm, gmt, x2n)

    out = out[..., :C2]                                   # drop channel padding
    if return_nchw:
        out = jnp.transpose(out, (0, 3, 1, 2))            # back to NCHW
    return out


def reference(x1, x2, w, b, gamma, beta, groups=16, eps=1e-5):
    y = lax.conv_general_dilated(x1, w, (1, 1), ((1, 1), (1, 1)),
                                 dimension_numbers=('NCHW', 'OIHW', 'NCHW'))
    y = y + b[None, :, None, None]
    B, C, H, W = y.shape
    yg = y.reshape(B, groups, C // groups, H, W)
    mu = yg.mean(axis=(2, 3, 4), keepdims=True)
    var = yg.var(axis=(2, 3, 4), keepdims=True)
    yn = ((yg - mu) / jnp.sqrt(var + eps)).reshape(B, C, H, W)
    yn = yn * gamma[None, :, None, None] + beta[None, :, None, None]
    p = lax.reduce_window(yn, -jnp.inf, lax.max, (1, 1, 3, 3), (1, 1, 2, 2),
                          ((0, 0), (0, 0), (1, 1), (1, 1)))
    return jnp.maximum(p, 0.0) + x2


if __name__ == "__main__":
    B, C1, C2, H, W = 2, 4, 32, 16, 16      # C2 divisible by 16 (GroupNorm groups)
    Ho = Wo = H // 2

    key = jax.random.PRNGKey(0)
    k1, k2, k3, k4, k5, k6 = jax.random.split(key, 6)
    x1 = jax.random.normal(k1, (B, C1, H, W), jnp.float32)
    x2 = jax.random.normal(k2, (B, C2, Ho, Wo), jnp.float32)
    w = 0.2 * jax.random.normal(k3, (C2, C1, 3, 3), jnp.float32)
    b = 0.1 * jax.random.normal(k4, (C2,), jnp.float32)
    gamma = 1.0 + 0.1 * jax.random.normal(k5, (C2,), jnp.float32)
    beta = 0.1 * jax.random.normal(k6, (C2,), jnp.float32)

    ref = reference(x1, x2, w, b, gamma, beta)

    # f32 MXU path with 4 row strips: exercises strip carry + cross-strip GN stats.
    run_f32 = jax.jit(functools.partial(fused_conv_gn_pool_residual,
                                        input_dtype=jnp.float32, rows_per_strip=2))
    out_f32 = jax.block_until_ready(run_f32(x1, x2, w, b, gamma, beta))
    assert out_f32.shape == ref.shape == (B, C2, Ho, Wo)
    err_f32 = float(jnp.max(jnp.abs(out_f32 - ref)))

    # bf16 MXU-operand path (f32 accumulation/stats), auto strip height, bf16 output.
    run_bf16 = jax.jit(functools.partial(fused_conv_gn_pool_residual,
                                         input_dtype=jnp.bfloat16,
                                         out_dtype=jnp.bfloat16))
    out_bf16 = jax.block_until_ready(run_bf16(x1, x2, w, b, gamma, beta))
    err_bf16 = float(jnp.max(jnp.abs(out_bf16.astype(jnp.float32) - ref)))

    if err_f32 < 5e-3 and err_bf16 < 1e-1:
        print("KERNEL_OK")
    else:
        raise SystemExit(
            f"mismatch vs reference: f32 err={err_f32}, bf16 err={err_bf16}")
</pallas_src>

<mosaic_0001>
module attributes {stable_mosaic.version = 11 : i64} {
  func.func @kernel(%arg0: i32, %arg1: i32, %arg2: i32, %arg3: memref<1x6x18x16xf32, #tpu.memory_space<vmem>>, %arg4: memref<9x16x128xf32, #tpu.memory_space<vmem>>, %arg5: memref<1x128xf32, #tpu.memory_space<vmem>>, %arg6: memref<1x128xf32, #tpu.memory_space<vmem>>, %arg7: memref<1x128xf32, #tpu.memory_space<vmem>>, %arg8: memref<128x16xf32, #tpu.memory_space<vmem>>, %arg9: memref<16x128xf32, #tpu.memory_space<vmem>>, %arg10: memref<1x2x8x128xf32, #tpu.memory_space<vmem>>, %arg11: memref<1x2x8x128xf32, #tpu.memory_space<vmem>>, %arg12: memref<1x128xf32, #tpu.memory_space<vmem>>, %arg13: memref<1x128xf32, #tpu.memory_space<vmem>>, %arg14: memref<1x128xf32, #tpu.memory_space<vmem>>, %arg15: memref<1x128xf32, #tpu.memory_space<vmem>>, %arg16: memref<1x16x128xf32, #tpu.memory_space<vmem>>, %arg17: memref<2x16x128xf32, #tpu.memory_space<vmem>>) attributes {dimension_semantics = [#tpu.dimension_semantics<parallel>, #tpu.dimension_semantics<arbitrary>, #tpu.dimension_semantics<arbitrary>], iteration_bounds = array<i64: 2, 2, 4>, scalar_prefetch = 0 : i64, scratch_operands = 6 : i64, tpu.core_type = #tpu.core_type<tc>, window_params = [{transform_indices = @transform_0, window_bounds = array<i64: 1, 6, 18, 16>}, {pipeline_mode = #tpu.pipeline_mode<synchronous>, transform_indices = @transform_1, window_bounds = array<i64: 9, 16, 128>}, {pipeline_mode = #tpu.pipeline_mode<synchronous>, transform_indices = @transform_2, window_bounds = array<i64: 1, 128>}, {pipeline_mode = #tpu.pipeline_mode<synchronous>, transform_indices = @transform_3, window_bounds = array<i64: 1, 128>}, {pipeline_mode = #tpu.pipeline_mode<synchronous>, transform_indices = @transform_4, window_bounds = array<i64: 1, 128>}, {pipeline_mode = #tpu.pipeline_mode<synchronous>, transform_indices = @transform_5, window_bounds = array<i64: 128, 16>}, {pipeline_mode = #tpu.pipeline_mode<synchronous>, transform_indices = @transform_6, window_bounds = array<i64: 16, 128>}, {transform_indices = @transform_7, window_bounds = array<i64: 1, 2, 8, 128>}, {transform_indices = @transform_8, window_bounds = array<i64: 1, 2, 8, 128>}]} {
    %cst = arith.constant 0.000000e+00 : f32
    %0 = vector.broadcast %cst : f32 to vector<64x128xf32>
    %c0 = arith.constant 0 : index
    %c0_0 = arith.constant 0 : index
    %c0_1 = arith.constant 0 : index
    %c0_2 = arith.constant 0 : index
    %1 = vector.load %arg3[%c0, %c0_0, %c0_1, %c0_2] : memref<1x6x18x16xf32, #tpu.memory_space<vmem>>, vector<1x4x16x16xf32>
    %2 = vector.shape_cast %1 : vector<1x4x16x16xf32> to vector<4x16x16xf32>
    %3 = vector.shape_cast %2 : vector<4x16x16xf32> to vector<64x16xf32>
    %c0_3 = arith.constant 0 : index
    %c0_4 = arith.constant 0 : index
    %c0_5 = arith.constant 0 : index
    %4 = vector.load %arg4[%c0_3, %c0_4, %c0_5] : memref<9x16x128xf32, #tpu.memory_space<vmem>>, vector<1x16x128xf32>
    %5 = vector.shape_cast %4 : vector<1x16x128xf32> to vector<16x128xf32>
    %cst_6 = arith.constant dense<0.000000e+00> : vector<64x128xf32>
    %6 = tpu.matmul %3, %5, %cst_6 {dimension_numbers = #tpu.dot_dimension_numbers<[1], [0], [0], [1], [0, 0, 1, 1], [], []>} : vector<64x16xf32>, vector<16x128xf32>, vector<64x128xf32> -> vector<64x128xf32>
    %7 = arith.addf %0, %6 : vector<64x128xf32>
    %c0_7 = arith.constant 0 : index
    %c0_8 = arith.constant 0 : index
    %c1 = arith.constant 1 : index
    %c0_9 = arith.constant 0 : index
    %8 = vector.load %arg3[%c0_7, %c0_8, %c1, %c0_9] : memref<1x6x18x16xf32, #tpu.memory_space<vmem>>, vector<1x4x16x16xf32>
    %9 = vector.shape_cast %8 : vector<1x4x16x16xf32> to vector<4x16x16xf32>
    %10 = vector.shape_cast %9 : vector<4x16x16xf32> to vector<64x16xf32>
    %c1_10 = arith.constant 1 : index
    %c0_11 = arith.constant 0 : index
    %c0_12 = arith.constant 0 : index
    %11 = vector.load %arg4[%c1_10, %c0_11, %c0_12] : memref<9x16x128xf32, #tpu.memory_space<vmem>>, vector<1x16x128xf32>
    %12 = vector.shape_cast %11 : vector<1x16x128xf32> to vector<16x128xf32>
    %cst_13 = arith.constant dense<0.000000e+00> : vector<64x128xf32>
    %13 = tpu.matmul %10, %12, %cst_13 {dimension_numbers = #tpu.dot_dimension_numbers<[1], [0], [0], [1], [0, 0, 1, 1], [], []>} : vector<64x16xf32>, vector<16x128xf32>, vector<64x128xf32> -> vector<64x128xf32>
    %14 = arith.addf %7, %13 : vector<64x128xf32>
    %c0_14 = arith.constant 0 : index
    %c0_15 = arith.constant 0 : index
    %c2 = arith.constant 2 : index
    %c0_16 = arith.constant 0 : index
    %15 = vector.load %arg3[%c0_14, %c0_15, %c2, %c0_16] : memref<1x6x18x16xf32, #tpu.memory_space<vmem>>, vector<1x4x16x16xf32>
    %16 = vector.shape_cast %15 : vector<1x4x16x16xf32> to vector<4x16x16xf32>
    %17 = vector.shape_cast %16 : vector<4x16x16xf32> to vector<64x16xf32>
    %c2_17 = arith.constant 2 : index
    %c0_18 = arith.constant 0 : index
    %c0_19 = arith.constant 0 : index
    %18 = vector.load %arg4[%c2_17, %c0_18, %c0_19] : memref<9x16x128xf32, #tpu.memory_space<vmem>>, vector<1x16x128xf32>
    %19 = vector.shape_cast %18 : vector<1x16x128xf32> to vector<16x128xf32>
    %cst_20 = arith.constant dense<0.000000e+00> : vector<64x128xf32>
    %20 = tpu.matmul %17, %19, %cst_20 {dimension_numbers = #tpu.dot_dimension_numbers<[1], [0], [0], [1], [0, 0, 1, 1], [], []>} : vector<64x16xf32>, vector<16x128xf32>, vector<64x128xf32> -> vector<64x128xf32>
    %21 = arith.addf %14, %20 : vector<64x128xf32>
    %c0_21 = arith.constant 0 : index
    %c1_22 = arith.constant 1 : index
    %c0_23 = arith.constant 0 : index
    %c0_24 = arith.constant 0 : index
    %22 = vector.load %arg3[%c0_21, %c1_22, %c0_23, %c0_24] : memref<1x6x18x16xf32, #tpu.memory_space<vmem>>, vector<1x4x16x16xf32>
    %23 = vector.shape_cast %22 : vector<1x4x16x16xf32> to vector<4x16x16xf32>
    %24 = vector.shape_cast %23 : vector<4x16x16xf32> to vector<64x16xf32>
    %c3 = arith.constant 3 : index
    %c0_25 = arith.constant 0 : index
    %c0_26 = arith.constant 0 : index
    %25 = vector.load %arg4[%c3, %c0_25, %c0_26] : memref<9x16x128xf32, #tpu.memory_space<vmem>>, vector<1x16x128xf32>
    %26 = vector.shape_cast %25 : vector<1x16x128xf32> to vector<16x128xf32>
    %cst_27 = arith.constant dense<0.000000e+00> : vector<64x128xf32>
    %27 = tpu.matmul %24, %26, %cst_27 {dimension_numbers = #tpu.dot_dimension_numbers<[1], [0], [0], [1], [0, 0, 1, 1], [], []>} : vector<64x16xf32>, vector<16x128xf32>, vector<64x128xf32> -> vector<64x128xf32>
    %28 = arith.addf %21, %27 : vector<64x128xf32>
    %c0_28 = arith.constant 0 : index
    %c1_29 = arith.constant 1 : index
    %c1_30 = arith.constant 1 : index
    %c0_31 = arith.constant 0 : index
    %29 = vector.load %arg3[%c0_28, %c1_29, %c1_30, %c0_31] : memref<1x6x18x16xf32, #tpu.memory_space<vmem>>, vector<1x4x16x16xf32>
    %30 = vector.shape_cast %29 : vector<1x4x16x16xf32> to vector<4x16x16xf32>
    %31 = vector.shape_cast %30 : vector<4x16x16xf32> to vector<64x16xf32>
    %c4 = arith.constant 4 : index
    %c0_32 = arith.constant 0 : index
    %c0_33 = arith.constant 0 : index
    %32 = vector.load %arg4[%c4, %c0_32, %c0_33] : memref<9x16x128xf32, #tpu.memory_space<vmem>>, vector<1x16x128xf32>
    %33 = vector.shape_cast %32 : vector<1x16x128xf32> to vector<16x128xf32>
    %cst_34 = arith.constant dense<0.000000e+00> : vector<64x128xf32>
    %34 = tpu.matmul %31, %33, %cst_34 {dimension_numbers = #tpu.dot_dimension_numbers<[1], [0], [0], [1], [0, 0, 1, 1], [], []>} : vector<64x16xf32>, vector<16x128xf32>, vector<64x128xf32> -> vector<64x128xf32>
    %35 = arith.addf %28, %34 : vector<64x128xf32>
    %c0_35 = arith.constant 0 : index
    %c1_36 = arith.constant 1 : index
    %c2_37 = arith.constant 2 : index
    %c0_38 = arith.constant 0 : index
    %36 = vector.load %arg3[%c0_35, %c1_36, %c2_37, %c0_38] : memref<1x6x18x16xf32, #tpu.memory_space<vmem>>, vector<1x4x16x16xf32>
    %37 = vector.shape_cast %36 : vector<1x4x16x16xf32> to vector<4x16x16xf32>
    %38 = vector.shape_cast %37 : vector<4x16x16xf32> to vector<64x16xf32>
    %c5 = arith.constant 5 : index
    %c0_39 = arith.constant 0 : index
    %c0_40 = arith.constant 0 : index
    %39 = vector.load %arg4[%c5, %c0_39, %c0_40] : memref<9x16x128xf32, #tpu.memory_space<vmem>>, vector<1x16x128xf32>
    %40 = vector.shape_cast %39 : vector<1x16x128xf32> to vector<16x128xf32>
    %cst_41 = arith.constant dense<0.000000e+00> : vector<64x128xf32>
    %41 = tpu.matmul %38, %40, %cst_41 {dimension_numbers = #tpu.dot_dimension_numbers<[1], [0], [0], [1], [0, 0, 1, 1], [], []>} : vector<64x16xf32>, vector<16x128xf32>, vector<64x128xf32> -> vector<64x128xf32>
    %42 = arith.addf %35, %41 : vector<64x128xf32>
    %c0_42 = arith.constant 0 : index
    %c2_43 = arith.constant 2 : index
    %c0_44 = arith.constant 0 : index
    %c0_45 = arith.constant 0 : index
    %43 = vector.load %arg3[%c0_42, %c2_43, %c0_44, %c0_45] : memref<1x6x18x16xf32, #tpu.memory_space<vmem>>, vector<1x4x16x16xf32>
    %44 = vector.shape_cast %43 : vector<1x4x16x16xf32> to vector<4x16x16xf32>
    %45 = vector.shape_cast %44 : vector<4x16x16xf32> to vector<64x16xf32>
    %c6 = arith.constant 6 : index
    %c0_46 = arith.constant 0 : index
    %c0_47 = arith.constant 0 : index
    %46 = vector.load %arg4[%c6, %c0_46, %c0_47] : memref<9x16x128xf32, #tpu.memory_space<vmem>>, vector<1x16x128xf32>
    %47 = vector.shape_cast %46 : vector<1x16x128xf32> to vector<16x128xf32>
    %cst_48 = arith.constant dense<0.000000e+00> : vector<64x128xf32>
    %48 = tpu.matmul %45, %47, %cst_48 {dimension_numbers = #tpu.dot_dimension_numbers<[1], [0], [0], [1], [0, 0, 1, 1], [], []>} : vector<64x16xf32>, vector<16x128xf32>, vector<64x128xf32> -> vector<64x128xf32>
    %49 = arith.addf %42, %48 : vector<64x128xf32>
    %c0_49 = arith.constant 0 : index
    %c2_50 = arith.constant 2 : index
    %c1_51 = arith.constant 1 : index
    %c0_52 = arith.constant 0 : index
    %50 = vector.load %arg3[%c0_49, %c2_50, %c1_51, %c0_52] : memref<1x6x18x16xf32, #tpu.memory_space<vmem>>, vector<1x4x16x16xf32>
    %51 = vector.shape_cast %50 : vector<1x4x16x16xf32> to vector<4x16x16xf32>
    %52 = vector.shape_cast %51 : vector<4x16x16xf32> to vector<64x16xf32>
    %c7 = arith.constant 7 : index
    %c0_53 = arith.constant 0 : index
    %c0_54 = arith.constant 0 : index
    %53 = vector.load %arg4[%c7, %c0_53, %c0_54] : memref<9x16x128xf32, #tpu.memory_space<vmem>>, vector<1x16x128xf32>
    %54 = vector.shape_cast %53 : vector<1x16x128xf32> to vector<16x128xf32>
    %cst_55 = arith.constant dense<0.000000e+00> : vector<64x128xf32>
    %55 = tpu.matmul %52, %54, %cst_55 {dimension_numbers = #tpu.dot_dimension_numbers<[1], [0], [0], [1], [0, 0, 1, 1], [], []>} : vector<64x16xf32>, vector<16x128xf32>, vector<64x128xf32> -> vector<64x128xf32>
    %56 = arith.addf %49, %55 : vector<64x128xf32>
    %c0_56 = arith.constant 0 : index
    %c2_57 = arith.constant 2 : index
    %c2_58 = arith.constant 2 : index
    %c0_59 = arith.constant 0 : index
    %57 = vector.load %arg3[%c0_56, %c2_57, %c2_58, %c0_59] : memref<1x6x18x16xf32, #tpu.memory_space<vmem>>, vector<1x4x16x16xf32>
    %58 = vector.shape_cast %57 : vector<1x4x16x16xf32> to vector<4x16x16xf32>
    %59 = vector.shape_cast %58 : vector<4x16x16xf32> to vector<64x16xf32>
    %c8 = arith.constant 8 : index
    %c0_60 = arith.constant 0 : index
    %c0_61 = arith.constant 0 : index
    %60 = vector.load %arg4[%c8, %c0_60, %c0_61] : memref<9x16x128xf32, #tpu.memory_space<vmem>>, vector<1x16x128xf32>
    %61 = vector.shape_cast %60 : vector<1x16x128xf32> to vector<16x128xf32>
    %cst_62 = arith.constant dense<0.000000e+00> : vector<64x128xf32>
    %62 = tpu.matmul %59, %61, %cst_62 {dimension_numbers = #tpu.dot_dimension_numbers<[1], [0], [0], [1], [0, 0, 1, 1], [], []>} : vector<64x16xf32>, vector<16x128xf32>, vector<64x128xf32> -> vector<64x128xf32>
    %63 = arith.addf %56, %62 : vector<64x128xf32>
    %c0_i32 = arith.constant 0 : i32
    %64 = arith.cmpi eq, %arg1, %c0_i32 : i32
    %65 = arith.extui %64 : i1 to i32
    %c0_i32_63 = arith.constant 0 : i32
    %66 = arith.cmpi ne, %65, %c0_i32_63 : i32
    scf.if %66 {
      %c0_i32_65 = arith.constant 0 : i32
      %70 = arith.cmpi eq, %arg2, %c0_i32_65 : i32
      %71 = arith.extui %70 : i1 to i32
      %c0_i32_66 = arith.constant 0 : i32
      %72 = arith.cmpi ne, %71, %c0_i32_66 : i32
      scf.if %72 {
        %cst_78 = arith.constant 0.000000e+00 : f32
        %87 = vector.broadcast %cst_78 : f32 to vector<1x128xf32>
        %c0_79 = arith.constant 0 : index
        %c0_80 = arith.constant 0 : index
        %88 = vector.load %arg12[%c0_79, %c0_80] : memref<1x128xf32, #tpu.memory_space<vmem>>, vector<1x128xf32>
        tpu.vector_store %arg12[%c0_79, %c0_80], %87 {strides = array<i32>} : memref<1x128xf32, #tpu.memory_space<vmem>>, vector<1x128xf32>,
        %cst_81 = arith.constant 0.000000e+00 : f32
        %89 = vector.broadcast %cst_81 : f32 to vector<1x128xf32>
        %c0_82 = arith.constant 0 : index
        %c0_83 = arith.constant 0 : index
        %90 = vector.load %arg13[%c0_82, %c0_83] : memref<1x128xf32, #tpu.memory_space<vmem>>, vector<1x128xf32>
        tpu.vector_store %arg13[%c0_82, %c0_83], %89 {strides = array<i32>} : memref<1x128xf32, #tpu.memory_space<vmem>>, vector<1x128xf32>,
      } else {
      }
      %c0_67 = arith.constant 0 : index
      %c0_68 = arith.constant 0 : index
      %73 = vector.load %arg12[%c0_67, %c0_68] : memref<1x128xf32, #tpu.memory_space<vmem>>, vector<1x128xf32>
      %cst_69 = arith.constant dense<0.000000e+00> : vector<128xf32>
      %74 = vector.multi_reduction <add>, %63, %cst_69 [0] : vector<64x128xf32> to vector<128xf32>
      %75 = vector.shape_cast %74 : vector<128xf32> to vector<1x128xf32>
      %76 = arith.addf %73, %75 : vector<1x128xf32>
      %c0_70 = arith.constant 0 : index
      %c0_71 = arith.constant 0 : index
      %77 = vector.load %arg12[%c0_70, %c0_71] : memref<1x128xf32, #tpu.memory_space<vmem>>, vector<1x128xf32>
      tpu.vector_store %arg12[%c0_70, %c0_71], %76 {strides = array<i32>} : memref<1x128xf32, #tpu.memory_space<vmem>>, vector<1x128xf32>,
      %c0_72 = arith.constant 0 : index
      %c0_73 = arith.constant 0 : index
      %78 = vector.load %arg13[%c0_72, %c0_73] : memref<1x128xf32, #tpu.memory_space<vmem>>, vector<1x128xf32>
      %79 = arith.mulf %63, %63 : vector<64x128xf32>
      %cst_74 = arith.constant dense<0.000000e+00> : vector<128xf32>
      %80 = vector.multi_reduction <add>, %79, %cst_74 [0] : vector<64x128xf32> to vector<128xf32>
      %81 = vector.shape_cast %80 : vector<128xf32> to vector<1x128xf32>
      %82 = arith.addf %78, %81 : vector<1x128xf32>
      %c0_75 = arith.constant 0 : index
      %c0_76 = arith.constant 0 : index
      %83 = vector.load %arg13[%c0_75, %c0_76] : memref<1x128xf32, #tpu.memory_space<vmem>>, vector<1x128xf32>
      tpu.vector_store %arg13[%c0_75, %c0_76], %82 {strides = array<i32>} : memref<1x128xf32, #tpu.memory_space<vmem>>, vector<1x128xf32>,
      %c3_i32 = arith.constant 3 : i32
      %84 = arith.cmpi eq, %arg2, %c3_i32 : i32
      %85 = arith.extui %84 : i1 to i32
      %c0_i32_77 = arith.constant 0 : i32
      %86 = arith.cmpi ne, %85, %c0_i32_77 : i32
      scf.if %86 {
        %c0_78 = arith.constant 0 : index
        %c0_79 = arith.constant 0 : index
        %87 = vector.load %arg5[%c0_78, %c0_79] : memref<1x128xf32, #tpu.memory_space<vmem>>, vector<1x128xf32>
        %c0_80 = arith.constant 0 : index
        %c0_81 = arith.constant 0 : index
        %88 = vector.load %arg12[%c0_80, %c0_81] : memref<1x128xf32, #tpu.memory_space<vmem>>, vector<1x128xf32>
        %cst_82 = arith.constant 2.560000e+02 : f32
        %89 = vector.broadcast %cst_82 : f32 to vector<1x128xf32>
        %90 = arith.mulf %89, %87 : vector<1x128xf32>
        %91 = arith.addf %88, %90 : vector<1x128xf32>
        %c0_83 = arith.constant 0 : index
        %c0_84 = arith.constant 0 : index
        %92 = vector.load %arg13[%c0_83, %c0_84] : memref<1x128xf32, #tpu.memory_space<vmem>>, vector<1x128xf32>
        %cst_85 = arith.constant 2.000000e+00 : f32
        %93 = vector.broadcast %cst_85 : f32 to vector<1x128xf32>
        %94 = arith.mulf %93, %87 : vector<1x128xf32>
        %c0_86 = arith.constant 0 : index
        %c0_87 = arith.constant 0 : index
        %95 = vector.load %arg12[%c0_86, %c0_87] : memref<1x128xf32, #tpu.memory_space<vmem>>, vector<1x128xf32>
        %96 = arith.mulf %94, %95 : vector<1x128xf32>
        %97 = arith.addf %92, %96 : vector<1x128xf32>
        %cst_88 = arith.constant 2.560000e+02 : f32
        %98 = vector.broadcast %cst_88 : f32 to vector<1x128xf32>
        %99 = arith.mulf %98, %87 : vector<1x128xf32>
        %100 = arith.mulf %99, %87 : vector<1x128xf32>
        %101 = arith.addf %97, %100 : vector<1x128xf32>
        %c0_89 = arith.constant 0 : index
        %c0_90 = arith.constant 0 : index
        %102 = vector.load %arg8[%c0_89, %c0_90] : memref<128x16xf32, #tpu.memory_space<vmem>>, vector<128x16xf32>
        %cst_91 = arith.constant dense<0.000000e+00> : vector<1x16xf32>
        %103 = tpu.matmul %91, %102, %cst_91 {dimension_numbers = #tpu.dot_dimension_numbers<[1], [0], [0], [1], [0, 0, 1, 1], [], []>} : vector<1x128xf32>, vector<128x16xf32>, vector<1x16xf32> -> vector<1x16xf32>
        %c0_92 = arith.constant 0 : index
        %c0_93 = arith.constant 0 : index
        %104 = vector.load %arg9[%c0_92, %c0_93] : memref<16x128xf32, #tpu.memory_space<vmem>>, vector<16x128xf32>
        %cst_94 = arith.constant dense<0.000000e+00> : vector<1x128xf32>
        %105 = tpu.matmul %103, %104, %cst_94 {dimension_numbers = #tpu.dot_dimension_numbers<[1], [0], [0], [1], [0, 0, 1, 1], [], []>} : vector<1x16xf32>, vector<16x128xf32>, vector<1x128xf32> -> vector<1x128xf32>
        %c0_95 = arith.constant 0 : index
        %c0_96 = arith.constant 0 : index
        %106 = vector.load %arg8[%c0_95, %c0_96] : memref<128x16xf32, #tpu.memory_space<vmem>>, vector<128x16xf32>
        %cst_97 = arith.constant dense<0.000000e+00> : vector<1x16xf32>
        %107 = tpu.matmul %101, %106, %cst_97 {dimension_numbers = #tpu.dot_dimension_numbers<[1], [0], [0], [1], [0, 0, 1, 1], [], []>} : vector<1x128xf32>, vector<128x16xf32>, vector<1x16xf32> -> vector<1x16xf32>
        %c0_98 = arith.constant 0 : index
        %c0_99 = arith.constant 0 : index
        %108 = vector.load %arg9[%c0_98, %c0_99] : memref<16x128xf32, #tpu.memory_space<vmem>>, vector<16x128xf32>
        %cst_100 = arith.constant dense<0.000000e+00> : vector<1x128xf32>
        %109 = tpu.matmul %107, %108, %cst_100 {dimension_numbers = #tpu.dot_dimension_numbers<[1], [0], [0], [1], [0, 0, 1, 1], [], []>} : vector<1x16xf32>, vector<16x128xf32>, vector<1x128xf32> -> vector<1x128xf32>
        %110 = arith.mulf %105, %105 : vector<1x128xf32>
        %111 = arith.subf %109, %110 : vector<1x128xf32>
        %cst_101 = arith.constant 0.000000e+00 : f32
        %112 = vector.broadcast %cst_101 : f32 to vector<1x128xf32>
        %113 = arith.maximumf %111, %112 : vector<1x128xf32>
        %cst_102 = arith.constant 9.99999974E-6 : f32
        %114 = vector.broadcast %cst_102 : f32 to vector<1x128xf32>
        %115 = arith.addf %113, %114 : vector<1x128xf32>
        %116 = math.rsqrt %115 : vector<1x128xf32>
        %c0_103 = arith.constant 0 : index
        %c0_104 = arith.constant 0 : index
        %117 = vector.load %arg6[%c0_103, %c0_104] : memref<1x128xf32, #tpu.memory_space<vmem>>, vector<1x128xf32>
        %118 = arith.mulf %117, %116 : vector<1x128xf32>
        %c0_105 = arith.constant 0 : index
        %c0_106 = arith.constant 0 : index
        %119 = vector.load %arg14[%c0_105, %c0_106] : memref<1x128xf32, #tpu.memory_space<vmem>>, vector<1x128xf32>
        tpu.vector_store %arg14[%c0_105, %c0_106], %118 {strides = array<i32>} : memref<1x128xf32, #tpu.memory_space<vmem>>, vector<1x128xf32>,
        %c0_107 = arith.constant 0 : index
        %c0_108 = arith.constant 0 : index
        %120 = vector.load %arg7[%c0_107, %c0_108] : memref<1x128xf32, #tpu.memory_space<vmem>>, vector<1x128xf32>
        %121 = arith.subf %87, %105 : vector<1x128xf32>
        %122 = arith.mulf %121, %118 : vector<1x128xf32>
        %123 = arith.addf %120, %122 : vector<1x128xf32>
        %c0_109 = arith.constant 0 : index
        %c0_110 = arith.constant 0 : index
        %124 = vector.load %arg15[%c0_109, %c0_110] : memref<1x128xf32, #tpu.memory_space<vmem>>, vector<1x128xf32>
        tpu.vector_store %arg15[%c0_109, %c0_110], %123 {strides = array<i32>} : memref<1x128xf32, #tpu.memory_space<vmem>>, vector<1x128xf32>,
      } else {
      }
    } else {
    }
    %c1_i32 = arith.constant 1 : i32
    %67 = arith.cmpi eq, %arg1, %c1_i32 : i32
    %68 = arith.extui %67 : i1 to i32
    %c0_i32_64 = arith.constant 0 : i32
    %69 = arith.cmpi ne, %68, %c0_i32_64 : i32
    scf.if %69 {
      %c0_i32_65 = arith.constant 0 : i32
      %70 = arith.cmpi eq, %arg2, %c0_i32_65 : i32
      %71 = arith.extui %70 : i1 to i32
      %c0_i32_66 = arith.constant 0 : i32
      %72 = arith.cmpi ne, %71, %c0_i32_66 : i32
      scf.if %72 {
        %cst_95 = arith.constant 0xFF800000 : f32
        %108 = vector.broadcast %cst_95 : f32 to vector<1x16x128xf32>
        %c0_96 = arith.constant 0 : index
        %c0_97 = arith.constant 0 : index
        %c0_98 = arith.constant 0 : index
        %109 = vector.load %arg16[%c0_96, %c0_97, %c0_98] : memref<1x16x128xf32, #tpu.memory_space<vmem>>, vector<1x16x128xf32>
        tpu.vector_store %arg16[%c0_96, %c0_97, %c0_98], %108 {strides = array<i32>} : memref<1x16x128xf32, #tpu.memory_space<vmem>>, vector<1x16x128xf32>,
      } else {
      }
      %c0_67 = arith.constant 0 : index
      %c0_68 = arith.constant 0 : index
      %c0_69 = arith.constant 0 : index
      %73 = vector.load %arg16[%c0_67, %c0_68, %c0_69] : memref<1x16x128xf32, #tpu.memory_space<vmem>>, vector<1x16x128xf32>
      %c0_70 = arith.constant 0 : index
      %c0_71 = arith.constant 0 : index
      %74 = vector.load %arg14[%c0_70, %c0_71] : memref<1x128xf32, #tpu.memory_space<vmem>>, vector<1x128xf32>
      %75 = vector.broadcast %74 : vector<1x128xf32> to vector<64x128xf32>
      %76 = arith.mulf %63, %75 : vector<64x128xf32>
      %c0_72 = arith.constant 0 : index
      %c0_73 = arith.constant 0 : index
      %77 = vector.load %arg15[%c0_72, %c0_73] : memref<1x128xf32, #tpu.memory_space<vmem>>, vector<1x128xf32>
      %78 = vector.broadcast %77 : vector<1x128xf32> to vector<64x128xf32>
      %79 = arith.addf %76, %78 : vector<64x128xf32>
      %80 = vector.shape_cast %79 : vector<64x128xf32> to vector<2x32x128xf32>
      %81 = vector.extract_strided_slice %80 {offsets = [0, 0, 0], sizes = [2, 16, 128], strides = [1, 1, 1]} : vector<2x32x128xf32> to vector<2x16x128xf32>
      %82 = vector.extract_strided_slice %80 {offsets = [0, 16, 0], sizes = [2, 16, 128], strides = [1, 1, 1]} : vector<2x32x128xf32> to vector<2x16x128xf32>
      %83 = vector.extract_strided_slice %82 {offsets = [1, 0, 0], sizes = [1, 16, 128], strides = [1, 1, 1]} : vector<2x16x128xf32> to vector<1x16x128xf32>
      %c0_74 = arith.constant 0 : index
      %c0_75 = arith.constant 0 : index
      %c0_76 = arith.constant 0 : index
      %84 = vector.load %arg16[%c0_74, %c0_75, %c0_76] : memref<1x16x128xf32, #tpu.memory_space<vmem>>, vector<1x16x128xf32>
      tpu.vector_store %arg16[%c0_74, %c0_75, %c0_76], %83 {strides = array<i32>} : memref<1x16x128xf32, #tpu.memory_space<vmem>>, vector<1x16x128xf32>,
      %85 = vector.extract_strided_slice %82 {offsets = [0, 0, 0], sizes = [1, 16, 128], strides = [1, 1, 1]} : vector<2x16x128xf32> to vector<1x16x128xf32>
      %86 = tpu.concatenate %73, %85 in 0 : vector<1x16x128xf32>, vector<1x16x128xf32> -> vector<2x16x128xf32>
      %87 = arith.maximumf %81, %82 : vector<2x16x128xf32>
      %88 = arith.maximumf %87, %86 : vector<2x16x128xf32>
      %89 = tpu.iota {dimensions = array<i32: 1>} : vector<2x16x128xi32>
      %c0_i32_77 = arith.constant 0 : i32
      %90 = vector.broadcast %c0_i32_77 : i32 to vector<2x16x128xi32>
      %91 = arith.cmpi eq, %89, %90 : vector<2x16x128xi32>
      %c1_i32_78 = arith.constant 1 : i32
      %92 = tpu.dynamic_rotate %88 by %c1_i32_78 dim 1 : vector<2x16x128xf32>, i32 -> vector<2x16x128xf32>
      %cst_79 = arith.constant 0xFF800000 : f32
      %93 = vector.broadcast %cst_79 : f32 to vector<2x16x128xf32>
      %94 = arith.select %91, %93, %92 : vector<2x16x128xi1>, vector<2x16x128xf32>
      %c15_i32 = arith.constant 15 : i32
      %95 = tpu.dynamic_rotate %88 by %c15_i32 dim 1 : vector<2x16x128xf32>, i32 -> vector<2x16x128xf32>
      %96 = arith.maximumf %94, %88 : vector<2x16x128xf32>
      %97 = arith.maximumf %96, %95 : vector<2x16x128xf32>
      %c0_80 = arith.constant 0 : index
      %c0_81 = arith.constant 0 : index
      %c0_82 = arith.constant 0 : index
      %98 = vector.load %arg17[%c0_80, %c0_81, %c0_82] : memref<2x16x128xf32, #tpu.memory_space<vmem>>, vector<2x16x128xf32>
      tpu.vector_store %arg17[%c0_80, %c0_81, %c0_82], %97 {strides = array<i32>} : memref<2x16x128xf32, #tpu.memory_space<vmem>>, vector<2x16x128xf32>,
      %c0_83 = arith.constant 0 : index
      %c0_84 = arith.constant 0 : index
      %c0_85 = arith.constant 0 : index
      %99 = tpu.strided_load %arg17[%c0_83, %c0_84, %c0_85] {strides = array<i32: 1, 2, 1>} : memref<2x16x128xf32, #tpu.memory_space<vmem>>, vector<2x8x128xf32>
      %cst_86 = arith.constant 0.000000e+00 : f32
      %100 = vector.broadcast %cst_86 : f32 to vector<2x8x128xf32>
      %101 = arith.maximumf %99, %100 : vector<2x8x128xf32>
      %c0_87 = arith.constant 0 : index
      %c0_88 = arith.constant 0 : index
      %c0_89 = arith.constant 0 : index
      %c0_90 = arith.constant 0 : index
      %102 = vector.load %arg10[%c0_87, %c0_88, %c0_89, %c0_90] : memref<1x2x8x128xf32, #tpu.memory_space<vmem>>, vector<1x2x8x128xf32>
      %103 = vector.shape_cast %102 : vector<1x2x8x128xf32> to vector<2x8x128xf32>
      %104 = arith.addf %101, %103 : vector<2x8x128xf32>
      %c0_91 = arith.constant 0 : index
      %c0_92 = arith.constant 0 : index
      %c0_93 = arith.constant 0 : index
      %c0_94 = arith.constant 0 : index
      %105 = vector.load %arg11[%c0_91, %c0_92, %c0_93, %c0_94] : memref<1x2x8x128xf32, #tpu.memory_space<vmem>>, vector<1x2x8x128xf32>
      %106 = vector.shape_cast %105 : vector<1x2x8x128xf32> to vector<2x8x128xf32>
      %107 = vector.shape_cast %104 : vector<2x8x128xf32> to vector<1x2x8x128xf32>
      tpu.vector_store %arg11[%c0_91, %c0_92, %c0_93, %c0_94], %107 {strides = array<i32>} : memref<1x2x8x128xf32, #tpu.memory_space<vmem>>, vector<1x2x8x128xf32>,
    } else {
    }
    return
  }
  func.func @transform_0(%arg0: i32, %arg1: i32, %arg2: i32) -> (i32, i32, i32, i32) {
    %c4_i32 = arith.constant 4 : i32
    %0 = arith.muli %arg0, %c4_i32 : i32
    %1 = arith.addi %0, %arg2 : i32
    %c0_i32 = arith.constant 0 : i32
    %c0_i32_0 = arith.constant 0 : i32
    %c0_i32_1 = arith.constant 0 : i32
    %c0_i32_2 = arith.constant 0 : i32
    return %1, %c0_i32, %c0_i32_0, %c0_i32_1 : i32, i32, i32, i32
  }
  func.func @transform_1(%arg0: i32, %arg1: i32, %arg2: i32) -> (i32, i32, i32) {
    %c0_i32 = arith.constant 0 : i32
    %c0_i32_0 = arith.constant 0 : i32
    %c0_i32_1 = arith.constant 0 : i32
    %c0_i32_2 = arith.constant 0 : i32
    return %c0_i32, %c0_i32_0, %c0_i32_1 : i32, i32, i32
  }
  func.func @transform_2(%arg0: i32, %arg1: i32, %arg2: i32) -> (i32, i32) {
    %c0_i32 = arith.constant 0 : i32
    %c0_i32_0 = arith.constant 0 : i32
    %c0_i32_1 = arith.constant 0 : i32
    return %c0_i32, %c0_i32_0 : i32, i32
  }
  func.func @transform_3(%arg0: i32, %arg1: i32, %arg2: i32) -> (i32, i32) {
    %c0_i32 = arith.constant 0 : i32
    %c0_i32_0 = arith.constant 0 : i32
    %c0_i32_1 = arith.constant 0 : i32
    return %c0_i32, %c0_i32_0 : i32, i32
  }
  func.func @transform_4(%arg0: i32, %arg1: i32, %arg2: i32) -> (i32, i32) {
    %c0_i32 = arith.constant 0 : i32
    %c0_i32_0 = arith.constant 0 : i32
    %c0_i32_1 = arith.constant 0 : i32
    return %c0_i32, %c0_i32_0 : i32, i32
  }
  func.func @transform_5(%arg0: i32, %arg1: i32, %arg2: i32) -> (i32, i32) {
    %c0_i32 = arith.constant 0 : i32
    %c0_i32_0 = arith.constant 0 : i32
    %c0_i32_1 = arith.constant 0 : i32
    return %c0_i32, %c0_i32_0 : i32, i32
  }
  func.func @transform_6(%arg0: i32, %arg1: i32, %arg2: i32) -> (i32, i32) {
    %c0_i32 = arith.constant 0 : i32
    %c0_i32_0 = arith.constant 0 : i32
    %c0_i32_1 = arith.constant 0 : i32
    return %c0_i32, %c0_i32_0 : i32, i32
  }
  func.func @transform_7(%arg0: i32, %arg1: i32, %arg2: i32) -> (i32, i32, i32, i32) {
    %0 = arith.muli %arg2, %arg1 : i32
    %c0_i32 = arith.constant 0 : i32
    %c0_i32_0 = arith.constant 0 : i32
    %c0_i32_1 = arith.constant 0 : i32
    return %arg0, %0, %c0_i32, %c0_i32_0 : i32, i32, i32, i32
  }
  func.func @transform_8(%arg0: i32, %arg1: i32, %arg2: i32) -> (i32, i32, i32, i32) {
    %0 = arith.muli %arg2, %arg1 : i32
    %c0_i32 = arith.constant 0 : i32
    %c0_i32_0 = arith.constant 0 : i32
    %c0_i32_1 = arith.constant 0 : i32
    return %arg0, %0, %c0_i32, %c0_i32_0 : i32, i32, i32, i32
  }
}

</mosaic_0001>

<llo_original>
// kernel: sub.5
$region0: #{sub.5}
  #allocation0 [shape = 's32[1]{0}', space=sflag, size = 0x4, scoped, tag = 'scoped memory for sub.5']
  %s0 = inlined_call_operand.vmem [shape: f32[32], index: 0, kind: input, shape index: {}]
  %s1 = inlined_call_operand.vmem [shape: f32[32], index: 1, kind: input, shape index: {}]
  %s2 = inlined_call_operand.vmem [shape: f32[32], index: 2, kind: output, shape index: {}]
  %v3 = vld [vmem:[%s0] sm:$0x1]
  %v4 = vld [vmem:[%s1] sm:$0x1]
  %5 = xla_tuple %v3, %v4
  %6 = xla_tuple %5
  %v7 = vsub.f32 %v3, %v4
  %8 = xla_tuple %v7
  %9 = vst [vmem:[%s2] sm:$0x1] %v7

// kernel: fused_conv_gn_pool_residual.1
$region0: #{fused_conv_gn_pool_residual.1}
  #allocation0 [shape = 'u32[]', space=smem, size = 0x4, offset = 0x4, fixed_abs, tag = 'smem constant byte address 0x4 - core index']
  #allocation1 [shape = 'u32[144,128]{1,0:T(1,128)}', space=vmem, size = 0x12000, scoped, tag = 'internal scratch']
  #allocation2 [shape = 'f32[1,128]{1,0:T(1,128)}', space=vmem, size = 0x200, scoped, tag = 'scratch operand']
  #allocation3 [shape = 'f32[1,128]{1,0:T(1,128)}', space=vmem, size = 0x200, scoped, tag = 'scratch operand']
  #allocation4 [shape = 'f32[1,128]{1,0:T(1,128)}', space=vmem, size = 0x200, scoped, tag = 'scratch operand']
  #allocation5 [shape = 'f32[1,128]{1,0:T(1,128)}', space=vmem, size = 0x200, scoped, tag = 'scratch operand']
  #allocation6 [shape = 'f32[1,16,128]{2,1,0:T(8,128)}', space=vmem, size = 0x2000, scoped, tag = 'scratch operand']
  #allocation7 [shape = 'f32[2,16,128]{2,1,0:T(8,128)}', space=vmem, size = 0x4000, scoped, tag = 'scratch operand']
  %s0 = inlined_call_operand.vmem [shape: f32[8,6,18,16], index: 0, kind: input, shape index: {}]
  %s1 = inlined_call_operand.vmem [shape: f32[9,16,128], index: 1, kind: input, shape index: {}]
  %s2 = inlined_call_operand.vmem [shape: f32[1,128], index: 2, kind: input, shape index: {}]
  %s3 = inlined_call_operand.vmem [shape: f32[1,128], index: 3, kind: input, shape index: {}]
  %s4 = inlined_call_operand.vmem [shape: f32[1,128], index: 4, kind: input, shape index: {}]
  %s5 = inlined_call_operand.vmem [shape: f32[128,16], index: 5, kind: input, shape index: {}]
  %s6 = inlined_call_operand.vmem [shape: f32[16,128], index: 6, kind: input, shape index: {}]
  %s7 = inlined_call_operand.vmem [shape: f32[2,8,8,128], index: 7, kind: input, shape index: {}]
  %s8 = inlined_call_operand.vmem [shape: f32[2,8,8,128], index: 8, kind: output, shape index: {}]
  %s9 = sld [smem:[#allocation0]]
  $region85: #{fused_conv_gn_pool_residual.1} parent=0
    _
  %s11 = ssub.s32 1, %s9
  %s12 = scalar_select 0, %s11, %s9
  loop: start=0, step=1, limit=18
  $region2: #{fused_conv_gn_pool_residual.1} parent=0 // loop_pre_header
    _
  $region3: #{fused_conv_gn_pool_residual.1} parent=0 // loop_header
    %s14 = sphi 0, %s18
    %p15 = scmp.ge.s32.totalorder %s14, 18
    %s21 = sphi 0, %s40
    %s22 = sphi 0, %s36
    %s23 = sphi 0, %s32
    %s24 = sphi 0, %s21
    %s25 = sphi 0, %s22
    %s26 = sphi 0, %s23
    %s27 = sphi 0, %s24
    %s28 = sphi 0, %s25
    %s29 = sphi 0, %s26
    %s47 = sphi 0, %s49
    %s50 = sphi 0, %s47
    %s51 = sphi 0, %s50
    %s67 = sphi 0, %s51
    %s71 = sphi 0, %s71
    %s73 = sphi 0, %s71
    %s74 = sphi 0, %s73
    %s88 = sphi 0, %s74
    %s92 = sphi 0, %s92
    %s94 = sphi 0, %s92
    %s95 = sphi 0, %s94
    %s109 = sphi 0, %s95
    %s113 = sphi 0, %s113
    %s115 = sphi 0, %s113
    %s116 = sphi 0, %s115
    %s130 = sphi 0, %s116
    %s134 = sphi 0, %s134
    %s136 = sphi 0, %s134
    %s137 = sphi 0, %s136
    %s151 = sphi 0, %s137
    %s155 = sphi 0, %s155
    %s157 = sphi 0, %s155
    %s158 = sphi 0, %s157
    %s172 = sphi 0, %s158
    %s176 = sphi 0, %s176
    %s178 = sphi 0, %s176
    %s179 = sphi 0, %s178
    %s193 = sphi 0, %s179
    %s203 = sphi 0, %s205
    %s206 = sphi 0, %s203
    %s207 = sphi 0, %s206
    %s223 = sphi 0, %s207
    %s233 = sphi 0, %s235
    %s236 = sphi 0, %s233
    %s237 = sphi 0, %s236
    %s253 = sphi 0, %s237
  $region4: #{fused_conv_gn_pool_residual.1} parent=0 // loop_header_branch
    %17 = sbr.rel (%p15) target = $region8
  $region5: #{fused_conv_gn_pool_residual.1} parent=0 // loop_body
    %s19 = ssub.s32 %s14, 1
    %s20 = ssub.s32 %s14, 2
    %s30 = sadd.s32 1, %s23
    %p31 = scmp.ge.s32.totalorder %s30, 4
    %s32 = scalar_select %p31, 0, %s30
    %s33 = sadd.s32 1, %s22
    %s34 = scalar_select %p31, %s33, %s22
    %p35 = scmp.ge.s32.totalorder %s34, 2
    %s36 = scalar_select %p35, 0, %s34
    %s37 = sadd.s32 1, %s21
    %s38 = scalar_select %p35, %s37, %s21
    %p39 = scmp.ge.s32.totalorder %s38, 2
    %s40 = scalar_select %p39, 0, %s38
    %s41 = smul.u32 %s21, 4
    %s42 = sadd.s32 %s41, %s23
    %s43 = smul.u32 %s40, 4
    %s44 = sadd.s32 %s43, %s32
    %s45 = ssub.s32 %s42, %s44
    %p46 = scmp.eq.s32.totalorder %s45, 0
    %s48 = sadd.s32 %s47, 1
    %s49 = scalar_select %p46, %s47, %s48
    %p52 = pneg %p46
    %p53 = scmp.eq.s32.totalorder %s14, 15
    %p54 = por %p52, %p53
    %p55 = scmp.ne.s32.totalorder %s47, %s50
    %p56 = scmp.eq.s32.totalorder %s14, 0
    %p57 = por %p55, %p56
    %p58 = scmp.ne.s32.totalorder %s47, %s50
    %p59 = scmp.eq.s32.totalorder %s19, 15
    %p60 = por %p58, %p59
    %p61 = scmp.ne.s32.totalorder %s50, %s51
    %p62 = scmp.eq.s32.totalorder %s19, 0
    %p63 = por %p61, %p62
    %p64 = scmp.ne.s32.totalorder %s50, %s51
    %p65 = scmp.eq.s32.totalorder %s20, 15
    %p66 = por %p64, %p65
    %p68 = scmp.ne.s32.totalorder %s51, %s67
    %p69 = scmp.eq.s32.totalorder %s20, 0
    %p70 = por %p68, %p69
    %s72 = sadd.s32 %s71, 1
    %p75 = scmp.eq.s32.totalorder %s14, 15
    %p76 = scmp.ne.s32.totalorder %s71, %s73
    %p77 = scmp.eq.s32.totalorder %s14, 0
    %p78 = por %p76, %p77
    %p79 = scmp.ne.s32.totalorder %s71, %s73
    %p80 = scmp.eq.s32.totalorder %s19, 15
    %p81 = por %p79, %p80
    %p82 = scmp.ne.s32.totalorder %s73, %s74
    %p83 = scmp.eq.s32.totalorder %s19, 0
    %p84 = por %p82, %p83
    %p85 = scmp.ne.s32.totalorder %s73, %s74
    %p86 = scmp.eq.s32.totalorder %s20, 15
    %p87 = por %p85, %p86
    %p89 = scmp.ne.s32.totalorder %s74, %s88
    %p90 = scmp.eq.s32.totalorder %s20, 0
    %p91 = por %p89, %p90
    %s93 = sadd.s32 %s92, 1
    %p96 = scmp.eq.s32.totalorder %s14, 15
    %p97 = scmp.ne.s32.totalorder %s92, %s94
    %p98 = scmp.eq.s32.totalorder %s14, 0
    %p99 = por %p97, %p98
    %p100 = scmp.ne.s32.totalorder %s92, %s94
    %p101 = scmp.eq.s32.totalorder %s19, 15
    %p102 = por %p100, %p101
    %p103 = scmp.ne.s32.totalorder %s94, %s95
    %p104 = scmp.eq.s32.totalorder %s19, 0
    %p105 = por %p103, %p104
    %p106 = scmp.ne.s32.totalorder %s94, %s95
    %p107 = scmp.eq.s32.totalorder %s20, 15
    %p108 = por %p106, %p107
    %p110 = scmp.ne.s32.totalorder %s95, %s109
    %p111 = scmp.eq.s32.totalorder %s20, 0
    %p112 = por %p110, %p111
    %s114 = sadd.s32 %s113, 1
    %p117 = scmp.eq.s32.totalorder %s14, 15
    %p118 = scmp.ne.s32.totalorder %s113, %s115
    %p119 = scmp.eq.s32.totalorder %s14, 0
    %p120 = por %p118, %p119
    %p121 = scmp.ne.s32.totalorder %s113, %s115
    %p122 = scmp.eq.s32.totalorder %s19, 15
    %p123 = por %p121, %p122
    %p124 = scmp.ne.s32.totalorder %s115, %s116
    %p125 = scmp.eq.s32.totalorder %s19, 0
    %p126 = por %p124, %p125
    %p127 = scmp.ne.s32.totalorder %s115, %s116
    %p128 = scmp.eq.s32.totalorder %s20, 15
    %p129 = por %p127, %p128
    %p131 = scmp.ne.s32.totalorder %s116, %s130
    %p132 = scmp.eq.s32.totalorder %s20, 0
    %p133 = por %p131, %p132
    %s135 = sadd.s32 %s134, 1
    %p138 = scmp.eq.s32.totalorder %s14, 15
    %p139 = scmp.ne.s32.totalorder %s134, %s136
    %p140 = scmp.eq.s32.totalorder %s14, 0
    %p141 = por %p139, %p140
    %p142 = scmp.ne.s32.totalorder %s134, %s136
    %p143 = scmp.eq.s32.totalorder %s19, 15
    %p144 = por %p142, %p143
    %p145 = scmp.ne.s32.totalorder %s136, %s137
    %p146 = scmp.eq.s32.totalorder %s19, 0
    %p147 = por %p145, %p146
    %p148 = scmp.ne.s32.totalorder %s136, %s137
    %p149 = scmp.eq.s32.totalorder %s20, 15
    %p150 = por %p148, %p149
    %p152 = scmp.ne.s32.totalorder %s137, %s151
    %p153 = scmp.eq.s32.totalorder %s20, 0
    %p154 = por %p152, %p153
    %s156 = sadd.s32 %s155, 1
    %p159 = scmp.eq.s32.totalorder %s14, 15
    %p160 = scmp.ne.s32.totalorder %s155, %s157
    %p161 = scmp.eq.s32.totalorder %s14, 0
    %p162 = por %p160, %p161
    %p163 = scmp.ne.s32.totalorder %s155, %s157
    %p164 = scmp.eq.s32.totalorder %s19, 15
    %p165 = por %p163, %p164
    %p166 = scmp.ne.s32.totalorder %s157, %s158
    %p167 = scmp.eq.s32.totalorder %s19, 0
    %p168 = por %p166, %p167
    %p169 = scmp.ne.s32.totalorder %s157, %s158
    %p170 = scmp.eq.s32.totalorder %s20, 15
    %p171 = por %p169, %p170
    %p173 = scmp.ne.s32.totalorder %s158, %s172
    %p174 = scmp.eq.s32.totalorder %s20, 0
    %p175 = por %p173, %p174
    %s177 = sadd.s32 %s176, 1
    %p180 = scmp.eq.s32.totalorder %s14, 15
    %p181 = scmp.ne.s32.totalorder %s176, %s178
    %p182 = scmp.eq.s32.totalorder %s14, 0
    %p183 = por %p181, %p182
    %p184 = scmp.ne.s32.totalorder %s176, %s178
    %p185 = scmp.eq.s32.totalorder %s19, 15
    %p186 = por %p184, %p185
    %p187 = scmp.ne.s32.totalorder %s178, %s179
    %p188 = scmp.eq.s32.totalorder %s19, 0
    %p189 = por %p187, %p188
    %p190 = scmp.ne.s32.totalorder %s178, %s179
    %p191 = scmp.eq.s32.totalorder %s20, 15
    %p192 = por %p190, %p191
    %p194 = scmp.ne.s32.totalorder %s179, %s193
    %p195 = scmp.eq.s32.totalorder %s20, 0
    %p196 = por %p194, %p195
    %s197 = smul.u32 %s23, %s22
    %s198 = smul.u32 %s32, %s36
    %s199 = ssub.s32 %s21, %s40
    %s200 = ssub.s32 %s197, %s198
    %s201 = sor.u32 %s199, %s200
    %p202 = scmp.eq.s32.totalorder %s201, 0
    %s204 = sadd.s32 %s203, 1
    %s205 = scalar_select %p202, %s203, %s204
    %p208 = pneg %p202
    %p209 = scmp.eq.s32.totalorder %s14, 15
    %p210 = por %p208, %p209
    %p211 = scmp.ne.s32.totalorder %s203, %s206
    %p212 = scmp.eq.s32.totalorder %s14, 0
    %p213 = por %p211, %p212
    %p214 = scmp.ne.s32.totalorder %s203, %s206
    %p215 = scmp.eq.s32.totalorder %s19, 15
    %p216 = por %p214, %p215
    %p217 = scmp.ne.s32.totalorder %s206, %s207
    %p218 = scmp.eq.s32.totalorder %s19, 0
    %p219 = por %p217, %p218
    %p220 = scmp.ne.s32.totalorder %s206, %s207
    %p221 = scmp.eq.s32.totalorder %s20, 15
    %p222 = por %p220, %p221
    %p224 = scmp.ne.s32.totalorder %s207, %s223
    %p225 = scmp.eq.s32.totalorder %s20, 0
    %p226 = por %p224, %p225
    %s227 = smul.u32 %s23, %s22
    %s228 = smul.u32 %s32, %s36
    %s229 = ssub.s32 %s21, %s40
    %s230 = ssub.s32 %s227, %s228
    %s231 = sor.u32 %s229, %s230
    %p232 = scmp.eq.s32.totalorder %s231, 0
    %s234 = sadd.s32 %s233, 1
    %s235 = scalar_select %p232, %s233, %s234
    %p238 = pneg %p232
    %p239 = scmp.eq.s32.totalorder %s14, 15
    %p240 = por %p238, %p239
    %p241 = scmp.ne.s32.totalorder %s233, %s236
    %p242 = scmp.eq.s32.totalorder %s14, 0
    %p243 = por %p241, %p242
    %p244 = scmp.ne.s32.totalorder %s233, %s236
    %p245 = scmp.eq.s32.totalorder %s19, 15
    %p246 = por %p244, %p245
    %p247 = scmp.ne.s32.totalorder %s236, %s237
    %p248 = scmp.eq.s32.totalorder %s19, 0
    %p249 = por %p247, %p248
    %p250 = scmp.ne.s32.totalorder %s236, %s237
    %p251 = scmp.eq.s32.totalorder %s20, 15
    %p252 = por %p250, %p251
    %p254 = scmp.ne.s32.totalorder %s237, %s253
    %p255 = scmp.eq.s32.totalorder %s20, 0
    %p256 = por %p254, %p255
    %p257 = scmp.le.s32.totalorder 1, %s14
    %p258 = scmp.lt.s32.totalorder %s14, 17
    %p259 = pnand %p257, %p258
    %p260 = pneg %p259
    // Predicated region
    $region9: #{fused_conv_gn_pool_residual.1} parent=5 // pred_check
      _
    $region10: #{fused_conv_gn_pool_residual.1} parent=5 // pred_check_branch
      %262 = sbr.rel (%p259) target = $region12
    $region11: #{fused_conv_gn_pool_residual.1} parent=5 // pred_region
      %s263 = ssub.s32 %s14, 1
      // Predicated region
      $region13: #{fused_conv_gn_pool_residual.1} parent=11 // pred_check
        %p264 = pneg %p84
      $region14: #{fused_conv_gn_pool_residual.1} parent=11 // pred_check_branch
        %266 = sbr.rel (%p264) target = $region16
      $region15: #{fused_conv_gn_pool_residual.1} parent=11 // pred_region
        _
      $region16: #{fused_conv_gn_pool_residual.1} parent=11 // pred_fallthru
        _
      // Predicated region
      $region17: #{fused_conv_gn_pool_residual.1} parent=11 // pred_check
        %p267 = pneg %p105
      $region18: #{fused_conv_gn_pool_residual.1} parent=11 // pred_check_branch
        %269 = sbr.rel (%p267) target = $region20
      $region19: #{fused_conv_gn_pool_residual.1} parent=11 // pred_region
        _
      $region20: #{fused_conv_gn_pool_residual.1} parent=11 // pred_fallthru
        _
      // Predicated region
      $region21: #{fused_conv_gn_pool_residual.1} parent=11 // pred_check
        %p270 = pneg %p126
      $region22: #{fused_conv_gn_pool_residual.1} parent=11 // pred_check_branch
        %272 = sbr.rel (%p270) target = $region24
      $region23: #{fused_conv_gn_pool_residual.1} parent=11 // pred_region
        _
      $region24: #{fused_conv_gn_pool_residual.1} parent=11 // pred_fallthru
        _
      // Predicated region
      $region25: #{fused_conv_gn_pool_residual.1} parent=11 // pred_check
        %p273 = pneg %p147
      $region26: #{fused_conv_gn_pool_residual.1} parent=11 // pred_check_branch
        %275 = sbr.rel (%p273) target = $region28
      $region27: #{fused_conv_gn_pool_residual.1} parent=11 // pred_region
        _
      $region28: #{fused_conv_gn_pool_residual.1} parent=11 // pred_fallthru
        _
      // Predicated region
      $region29: #{fused_conv_gn_pool_residual.1} parent=11 // pred_check
        %p276 = pneg %p168
      $region30: #{fused_conv_gn_pool_residual.1} parent=11 // pred_check_branch
        %278 = sbr.rel (%p276) target = $region32
      $region31: #{fused_conv_gn_pool_residual.1} parent=11 // pred_region
        _
      $region32: #{fused_conv_gn_pool_residual.1} parent=11 // pred_fallthru
        _
      // Predicated region
      $region33: #{fused_conv_gn_pool_residual.1} parent=11 // pred_check
        %p279 = pneg %p189
      $region34: #{fused_conv_gn_pool_residual.1} parent=11 // pred_check_branch
        %281 = sbr.rel (%p279) target = $region36
      $region35: #{fused_conv_gn_pool_residual.1} parent=11 // pred_region
        _
      $region36: #{fused_conv_gn_pool_residual.1} parent=11 // pred_fallthru
        _
    $region12: #{fused_conv_gn_pool_residual.1} parent=5 // pred_fallthru
      _
    %p282 = scmp.lt.s32.totalorder %s14, 16
    // Predicated region
    $region37: #{fused_conv_gn_pool_residual.1} parent=5 // pred_check
      %p283 = pneg %p282
    $region38: #{fused_conv_gn_pool_residual.1} parent=5 // pred_check_branch
      %285 = sbr.rel (%p283) target = $region40
    $region39: #{fused_conv_gn_pool_residual.1} parent=5 // pred_region
      // Predicated region
      $region41: #{fused_conv_gn_pool_residual.1} parent=39 // pred_check
        %p286 = pneg %p57
      $region42: #{fused_conv_gn_pool_residual.1} parent=39 // pred_check_branch
        %288 = sbr.rel (%p286) target = $region44
      $region43: #{fused_conv_gn_pool_residual.1} parent=39 // pred_region
        %s289 = smul.u32 %s21, 4
        %s290 = sadd.s32 %s289, %s23
        %p291 = scmp.lt.s32.totalorder %s290, 7
        %s292 = scalar_select %p291, %s290, 7
        %s293 = smul.addr %s292, 18
        %s294 = smul.addr %s293, 8
        %s295 = scalar_lea.vmem %s0, %s294
        %s296 = smul.u32 %s21, 4
        %s297 = sadd.s32 %s296, %s23
      $region44: #{fused_conv_gn_pool_residual.1} parent=39 // pred_fallthru
        _
      // Predicated region
      $region45: #{fused_conv_gn_pool_residual.1} parent=39 // pred_check
        %p298 = pneg %p213
      $region46: #{fused_conv_gn_pool_residual.1} parent=39 // pred_check_branch
        %300 = sbr.rel (%p298) target = $region48
      $region47: #{fused_conv_gn_pool_residual.1} parent=39 // pred_region
        %s301 = smul.u32 %s23, %s22
        %s302 = smul.u32 2, %s301
        %p303 = scmp.lt.s32.totalorder %s21, 1
        %s304 = scalar_select %p303, %s21, 1
        %p305 = scmp.lt.s32.totalorder %s302, 7
        %s306 = scalar_select %p305, %s302, 7
        %s307 = smul.addr %s304, 8
        %s308 = sadd.s32 %s306, %s307
        %s309 = smul.addr %s308, 8
        %s310 = scalar_lea.vmem %s7, %s309
        %s311 = smul.u32 %s23, %s22
        %s312 = smul.u32 2, %s311
      $region48: #{fused_conv_gn_pool_residual.1} parent=39 // pred_fallthru
        _
    $region40: #{fused_conv_gn_pool_residual.1} parent=5 // pred_fallthru
      _
    %p313 = scmp.le.s32.totalorder 1, %s14
    %p314 = scmp.lt.s32.totalorder %s14, 17
    %p315 = pnand %p313, %p314
    %p316 = pneg %p315
    // Predicated region
    $region49: #{fused_conv_gn_pool_residual.1} parent=5 // pred_check
      _
    $region50: #{fused_conv_gn_pool_residual.1} parent=5 // pred_check_branch
      %318 = sbr.rel (%p315) target = $region52
    $region51: #{fused_conv_gn_pool_residual.1} parent=5 // pred_region
      %s319 = ssub.s32 %s14, 1
      %s320 = smul.u32 %s24, 4
      %s321 = sadd.s32 %s320, %s26
      %p322 = scmp.lt.s32.totalorder %s321, 7
      %s323 = scalar_select %p322, %s321, 7
      %s324 = smul.addr %s323, 18
      %s325 = smul.addr %s324, 8
      %s326 = scalar_lea.vmem %s0, %s325
      %p327 = pneg %p63
      %p328 = pneg %p60
      %p329 = pneg %p84
      %p330 = pneg %p81
      %p331 = pneg %p105
      %p332 = pneg %p102
      %p333 = pneg %p126
      %p334 = pneg %p123
      %p335 = pneg %p147
      %p336 = pneg %p144
      %p337 = pneg %p168
      %p338 = pneg %p165
      %p339 = pneg %p189
      %p340 = pneg %p186
      %s341 = smul.u32 %s26, %s25
      %s342 = smul.u32 2, %s341
      %p343 = scmp.lt.s32.totalorder %s24, 1
      %s344 = scalar_select %p343, %s24, 1
      %p345 = scmp.lt.s32.totalorder %s342, 7
      %s346 = scalar_select %p345, %s342, 7
      %s347 = smul.addr %s344, 8
      %s348 = sadd.s32 %s346, %s347
      %s349 = smul.addr %s348, 8
      %s350 = scalar_lea.vmem %s7, %s349
      %p351 = pneg %p219
      %p352 = pneg %p216
      %p353 = pneg %p249
      %p354 = pneg %p246
      %s355 = smul.u32 %s26, %s25
      %s356 = smul.u32 2, %s355
      %p357 = scmp.lt.s32.totalorder %s24, 1
      %s358 = scalar_select %p357, %s24, 1
      %p359 = scmp.lt.s32.totalorder %s356, 7
      %s360 = scalar_select %p359, %s356, 7
      %s361 = smul.addr %s358, 8
      %s362 = sadd.s32 %s360, %s361
      %s363 = smul.addr %s362, 8
      %s364 = scalar_lea.vmem %s8, %s363
      %s365 = smul.u32 %s24, 4
      %s366 = sadd.s32 %s365, %s26
      %p367 = scmp.lt.s32.totalorder %s366, 7
      %s368 = scalar_select %p367, %s366, 7
      %s369 = smul.addr %s368, 18
      %s370 = smul.addr %s369, 8
      %s371 = scalar_lea.vmem %s0, %s370
      %s372 = smul.u32 %s24, 4
      %s373 = sadd.s32 %s372, %s26
      %s374 = smul.u32 %s26, %s25
      %s375 = smul.u32 2, %s374
      %p376 = scmp.lt.s32.totalorder %s24, 1
      %s377 = scalar_select %p376, %s24, 1
      %p378 = scmp.lt.s32.totalorder %s375, 7
      %s379 = scalar_select %p378, %s375, 7
      %s380 = smul.addr %s377, 8
      %s381 = sadd.s32 %s379, %s380
      %s382 = smul.addr %s381, 8
      %s383 = scalar_lea.vmem %s7, %s382
      %s384 = smul.u32 %s26, %s25
      %s385 = smul.u32 2, %s384
      %s386 = smul.u32 %s26, %s25
      %s387 = smul.u32 2, %s386
      %p388 = scmp.lt.s32.totalorder %s24, 1
      %s389 = scalar_select %p388, %s24, 1
      %p390 = scmp.lt.s32.totalorder %s387, 7
      %s391 = scalar_select %p390, %s387, 7
      %s392 = smul.addr %s389, 8
      %s393 = sadd.s32 %s391, %s392
      %s394 = smul.addr %s393, 8
      %s395 = scalar_lea.vmem %s8, %s394
      %s396 = smul.u32 %s26, %s25
      %s397 = smul.u32 2, %s396
      %v398 = vld [vmem:[%s371] sm:$0xff]
      %v399 = vld [vmem:[%s371 + $0x8] sm:$0xff]
      %v400 = vld [vmem:[%s371 + $0x18] sm:$0xff]
      %v401 = vld [vmem:[%s371 + $0x20] sm:$0xff]
      %v402 = vld [vmem:[%s371 + $0x30] sm:$0xff]
      %v403 = vld [vmem:[%s371 + $0x38] sm:$0xff]
      %v404 = vld [vmem:[%s371 + $0x48] sm:$0xff]
      %v405 = vld [vmem:[%s371 + $0x50] sm:$0xff]
      %v406 = vld [vmem:[%s1] sm:$0xff]
      %v407 = vld [vmem:[%s1 + $0x8] sm:$0xff]
      %v408 = vld [vmem:[%s371 + $0x1] sm:$0xff]
      %v409 = vld [vmem:[%s371 + $0x9] sm:$0xff]
      %v410 = vld [vmem:[%s371 + $0x19] sm:$0xff]
      %v411 = vld [vmem:[%s371 + $0x21] sm:$0xff]
      %v412 = vld [vmem:[%s371 + $0x31] sm:$0xff]
      %v413 = vld [vmem:[%s371 + $0x39] sm:$0xff]
      %v414 = vld [vmem:[%s371 + $0x49] sm:$0xff]
      %v415 = vld [vmem:[%s371 + $0x51] sm:$0xff]
      %s416 = scalar_lea.vmem %s1, 16
      %v417 = vld [vmem:[%s416] sm:$0xff]
      %v418 = vld [vmem:[%s416 + $0x8] sm:$0xff]
      %vm419 = vcmask 130048
      %v421 = vsel %vm419, %v408, 0
      %v424 = vsel %vm419, %v409, 0
      %v427 = vsel %vm419, %v410, 0
      %v430 = vsel %vm419, %v411, 0
      %v433 = vsel %vm419, %v412, 0
      %v436 = vsel %vm419, %v413, 0
      %v439 = vsel %vm419, %v414, 0
      %v442 = vsel %vm419, %v415, 0
      %444 = vmatprep.subr.mxu0 0.0
      %445 = vmatpush1.msra.mxu0 0.0
      %446 = vmatprep.subr.mxu0 0.0
      %447 = vmatpush1.msra.mxu0 0.0
      %448 = vmatprep.subr.mxu0 0.0
      %449 = vmatpush1.msra.mxu0 0.0
      %450 = vmatprep.subr.mxu0 0.0
      %451 = vmatpush1.msra.mxu0 0.0
      %452 = vmatprep.subr.mxu0 0.0
      %453 = vmatpush1.msra.mxu0 0.0
      %454 = vmatprep.subr.mxu0 0.0
      %455 = vmatpush1.msra.mxu0 0.0
      %456 = vmatprep.subr.mxu0 0.0
      %457 = vmatpush1.msra.mxu0 0.0
      %458 = vmatprep.subr.mxu0 0.0
      %459 = vmatpush1.msra.mxu0 0.0
      %460 = vmatprep.subr.mxu0 0.0
      %461 = vmatpush1.msra.mxu0 0.0
      %462 = vmatprep.subr.mxu0 0.0
      %463 = vmatpush1.msra.mxu0 0.0
      %464 = vmatprep.subr.mxu0 0.0
      %465 = vmatpush1.msra.mxu0 0.0
      %466 = vmatprep.subr.mxu0 0.0
      %467 = vmatpush1.msra.mxu0 0.0
      %468 = vmatprep.subr.mxu0 0.0
      %469 = vmatpush1.msra.mxu0 0.0
      %470 = vmatprep.subr.mxu0 0.0
      %471 = vmatpush1.msra.mxu0 0.0
      %472 = vmatprep.subr.mxu0 0.0
      %473 = vmatpush1.msra.mxu0 %v418
      %474 = vmatprep.subr.mxu0 0.0
      %475 = vmatpush1.msra.mxu0 %v417
      %476 = vmatprep.subr.mxu0 0.0
      %477 = vmatpush2.msra.mxu0 0.0
      %478 = vmatprep.subr.mxu0 0.0
      %479 = vmatpush2.msra.mxu0 0.0
      %480 = vmatprep.subr.mxu0 0.0
      %481 = vmatpush2.msra.mxu0 0.0
      %482 = vmatprep.subr.mxu0 0.0
      %483 = vmatpush2.msra.mxu0 0.0
      %484 = vmatprep.subr.mxu0 0.0
      %485 = vmatpush2.msra.mxu0 0.0
      %486 = vmatprep.subr.mxu0 0.0
      %487 = vmatpush2.msra.mxu0 0.0
      %488 = vmatprep.subr.mxu0 0.0
      %489 = vmatpush2.msra.mxu0 0.0
      %490 = vmatprep.subr.mxu0 0.0
      %491 = vmatpush2.msra.mxu0 0.0
      %492 = vmatprep.subr.mxu0 0.0
      %493 = vmatpush2.msra.mxu0 0.0
      %494 = vmatprep.subr.mxu0 0.0
      %495 = vmatpush2.msra.mxu0 0.0
      %496 = vmatprep.subr.mxu0 0.0
      %497 = vmatpush2.msra.mxu0 0.0
      %498 = vmatprep.subr.mxu0 0.0
      %499 = vmatpush2.msra.mxu0 0.0
      %500 = vmatprep.subr.mxu0 0.0
      %501 = vmatpush2.msra.mxu0 0.0
      %502 = vmatprep.subr.mxu0 0.0
      %503 = vmatpush2.msra.mxu0 0.0
      %504 = vmatprep.subr.mxu0 0.0
      %505 = vmatpush2.msra.mxu0 0.0
      %506 = vmatprep.subr.mxu0 0.0
      %507 = vmatpush2.msra.mxu0 0.0
      %508 = vmatprep.mubr.f32.mxu0 0.0
      %509 = vmatmul.mubr.f32.gmra.mxu0 %v421
      %v510 = vpop.f32.mrf.mxu0
      %v511 = vadd.f32 0.0, %v510
      %v512 = vpop.f32.mrf.mxu0
      %513 = vmatprep.mubr.f32.mxu0 0.0
      %514 = vmatmul.mubr.f32.gmra.mxu0 %v424
      %v515 = vpop.f32.mrf.mxu0
      %v516 = vadd.f32 0.0, %v515
      %v517 = vpop.f32.mrf.mxu0
      %518 = vmatprep.mubr.f32.mxu0 0.0
      %519 = vmatmul.mubr.f32.gmra.mxu0 %v427
      %v520 = vpop.f32.mrf.mxu0
      %v521 = vadd.f32 0.0, %v520
      %v522 = vpop.f32.mrf.mxu0
      %523 = vmatprep.mubr.f32.mxu0 0.0
      %524 = vmatmul.mubr.f32.gmra.mxu0 %v430
      %v525 = vpop.f32.mrf.mxu0
      %v526 = vadd.f32 0.0, %v525
      %v527 = vpop.f32.mrf.mxu0
      %528 = vmatprep.mubr.f32.mxu0 0.0
      %529 = vmatmul.mubr.f32.gmra.mxu0 %v433
      %v530 = vpop.f32.mrf.mxu0
      %v531 = vadd.f32 0.0, %v530
      %v532 = vpop.f32.mrf.mxu0
      %533 = vmatprep.mubr.f32.mxu0 0.0
      %534 = vmatmul.mubr.f32.gmra.mxu0 %v436
      %v535 = vpop.f32.mrf.mxu0
      %v536 = vadd.f32 0.0, %v535
      %v537 = vpop.f32.mrf.mxu0
      %538 = vmatprep.mubr.f32.mxu0 0.0
      %539 = vmatmul.mubr.f32.gmra.mxu0 %v439
      %v540 = vpop.f32.mrf.mxu0
      %v541 = vadd.f32 0.0, %v540
      %v542 = vpop.f32.mrf.mxu0
      %543 = vmatprep.mubr.f32.mxu0 0.0
      %544 = vmatmul.mubr.f32.gmra.mxu0 %v442
      %v545 = vpop.f32.mrf.mxu0
      %v546 = vadd.f32 0.0, %v545
      %v547 = vpop.f32.mrf.mxu0
      %548 = vdwg.mxu0
      %v550 = vsel %vm419, %v398, 0
      %v553 = vsel %vm419, %v399, 0
      %v556 = vsel %vm419, %v400, 0
      %v559 = vsel %vm419, %v401, 0
      %v562 = vsel %vm419, %v402, 0
      %v565 = vsel %vm419, %v403, 0
      %v568 = vsel %vm419, %v404, 0
      %v571 = vsel %vm419, %v405, 0
      %573 = vmatprep.subr.mxu0 0.0
      %574 = vmatpush1.msra.mxu0 0.0
      %575 = vmatprep.subr.mxu0 0.0
      %576 = vmatpush1.msra.mxu0 0.0
      %577 = vmatprep.subr.mxu0 0.0
      %578 = vmatpush1.msra.mxu0 0.0
      %579 = vmatprep.subr.mxu0 0.0
      %580 = vmatpush1.msra.mxu0 0.0
      %581 = vmatprep.subr.mxu0 0.0
      %582 = vmatpush1.msra.mxu0 0.0
      %583 = vmatprep.subr.mxu0 0.0
      %584 = vmatpush1.msra.mxu0 0.0
      %585 = vmatprep.subr.mxu0 0.0
      %586 = vmatpush1.msra.mxu0 0.0
      %587 = vmatprep.subr.mxu0 0.0
      %588 = vmatpush1.msra.mxu0 0.0
      %589 = vmatprep.subr.mxu0 0.0
      %590 = vmatpush1.msra.mxu0 0.0
      %591 = vmatprep.subr.mxu0 0.0
      %592 = vmatpush1.msra.mxu0 0.0
      %593 = vmatprep.subr.mxu0 0.0
      %594 = vmatpush1.msra.mxu0 0.0
      %595 = vmatprep.subr.mxu0 0.0
      %596 = vmatpush1.msra.mxu0 0.0
      %597 = vmatprep.subr.mxu0 0.0
      %598 = vmatpush1.msra.mxu0 0.0
      %599 = vmatprep.subr.mxu0 0.0
      %600 = vmatpush1.msra.mxu0 0.0
      %601 = vmatprep.subr.mxu0 0.0
      %602 = vmatpush1.msra.mxu0 %v407
      %603 = vmatprep.subr.mxu0 0.0
      %604 = vmatpush1.msra.mxu0 %v406
      %605 = vmatprep.subr.mxu0 0.0
      %606 = vmatpush2.msra.mxu0 0.0
      %607 = vmatprep.subr.mxu0 0.0
      %608 = vmatpush2.msra.mxu0 0.0
      %609 = vmatprep.subr.mxu0 0.0
      %610 = vmatpush2.msra.mxu0 0.0
      %611 = vmatprep.subr.mxu0 0.0
      %612 = vmatpush2.msra.mxu0 0.0
      %613 = vmatprep.subr.mxu0 0.0
      %614 = vmatpush2.msra.mxu0 0.0
      %615 = vmatprep.subr.mxu0 0.0
      %616 = vmatpush2.msra.mxu0 0.0
      %617 = vmatprep.subr.mxu0 0.0
      %618 = vmatpush2.msra.mxu0 0.0
      %619 = vmatprep.subr.mxu0 0.0
      %620 = vmatpush2.msra.mxu0 0.0
      %621 = vmatprep.subr.mxu0 0.0
      %622 = vmatpush2.msra.mxu0 0.0
      %623 = vmatprep.subr.mxu0 0.0
      %624 = vmatpush2.msra.mxu0 0.0
      %625 = vmatprep.subr.mxu0 0.0
      %626 = vmatpush2.msra.mxu0 0.0
      %627 = vmatprep.subr.mxu0 0.0
      %628 = vmatpush2.msra.mxu0 0.0
      %629 = vmatprep.subr.mxu0 0.0
      %630 = vmatpush2.msra.mxu0 0.0
      %631 = vmatprep.subr.mxu0 0.0
      %632 = vmatpush2.msra.mxu0 0.0
      %633 = vmatprep.subr.mxu0 0.0
      %634 = vmatpush2.msra.mxu0 0.0
      %635 = vmatprep.subr.mxu0 0.0
      %636 = vmatpush2.msra.mxu0 0.0
      %637 = vmatprep.mubr.f32.mxu0 0.0
      %638 = vmatmul.mubr.f32.gmra.mxu0 %v550
      %v639 = vpop.f32.mrf.mxu0
      %v640 = vadd.f32 %v511, %v639
      %v641 = vpop.f32.mrf.mxu0
      %642 = vmatprep.mubr.f32.mxu0 0.0
      %643 = vmatmul.mubr.f32.gmra.mxu0 %v553
      %v644 = vpop.f32.mrf.mxu0
      %v645 = vadd.f32 %v516, %v644
      %v646 = vpop.f32.mrf.mxu0
      %647 = vmatprep.mubr.f32.mxu0 0.0
      %648 = vmatmul.mubr.f32.gmra.mxu0 %v556
      %v649 = vpop.f32.mrf.mxu0
      %v650 = vadd.f32 %v521, %v649
      %v651 = vpop.f32.mrf.mxu0
      %652 = vmatprep.mubr.f32.mxu0 0.0
      %653 = vmatmul.mubr.f32.gmra.mxu0 %v559
      %v654 = vpop.f32.mrf.mxu0
      %v655 = vadd.f32 %v526, %v654
      %v656 = vpop.f32.mrf.mxu0
      %657 = vmatprep.mubr.f32.mxu0 0.0
      %658 = vmatmul.mubr.f32.gmra.mxu0 %v562
      %v659 = vpop.f32.mrf.mxu0
      %v660 = vadd.f32 %v531, %v659
      %v661 = vpop.f32.mrf.mxu0
      %662 = vmatprep.mubr.f32.mxu0 0.0
      %663 = vmatmul.mubr.f32.gmra.mxu0 %v565
      %v664 = vpop.f32.mrf.mxu0
      %v665 = vadd.f32 %v536, %v664
      %v666 = vpop.f32.mrf.mxu0
      %667 = vmatprep.mubr.f32.mxu0 0.0
      %668 = vmatmul.mubr.f32.gmra.mxu0 %v568
      %v669 = vpop.f32.mrf.mxu0
      %v670 = vadd.f32 %v541, %v669
      %v671 = vpop.f32.mrf.mxu0
      %672 = vmatprep.mubr.f32.mxu0 0.0
      %673 = vmatmul.mubr.f32.gmra.mxu0 %v571
      %v674 = vpop.f32.mrf.mxu0
      %v675 = vadd.f32 %v546, %v674
      %v676 = vpop.f32.mrf.mxu0
      %677 = vdwg.mxu0
      %v678 = vld [vmem:[%s371 + $0x2] sm:$0xff]
      %v679 = vld [vmem:[%s371 + $0xa] sm:$0xff]
      %v680 = vld [vmem:[%s371 + $0x1a] sm:$0xff]
      %v681 = vld [vmem:[%s371 + $0x22] sm:$0xff]
      %v682 = vld [vmem:[%s371 + $0x32] sm:$0xff]
      %v683 = vld [vmem:[%s371 + $0x3a] sm:$0xff]
      %v684 = vld [vmem:[%s371 + $0x4a] sm:$0xff]
      %v685 = vld [vmem:[%s371 + $0x52] sm:$0xff]
      %s686 = scalar_lea.vmem %s1, 32
      %v687 = vld [vmem:[%s686] sm:$0xff]
      %v688 = vld [vmem:[%s686 + $0x8] sm:$0xff]
      %v690 = vsel %vm419, %v678, 0
      %v693 = vsel %vm419, %v679, 0
      %v696 = vsel %vm419, %v680, 0
      %v699 = vsel %vm419, %v681, 0
      %v702 = vsel %vm419, %v682, 0
      %v705 = vsel %vm419, %v683, 0
      %v708 = vsel %vm419, %v684, 0
      %v711 = vsel %vm419, %v685, 0
      %713 = vmatprep.subr.mxu0 0.0
      %714 = vmatpush1.msra.mxu0 0.0
      %715 = vmatprep.subr.mxu0 0.0
      %716 = vmatpush1.msra.mxu0 0.0
      %717 = vmatprep.subr.mxu0 0.0
      %718 = vmatpush1.msra.mxu0 0.0
      %719 = vmatprep.subr.mxu0 0.0
      %720 = vmatpush1.msra.mxu0 0.0
      %721 = vmatprep.subr.mxu0 0.0
      %722 = vmatpush1.msra.mxu0 0.0
      %723 = vmatprep.subr.mxu0 0.0
      %724 = vmatpush1.msra.mxu0 0.0
      %725 = vmatprep.subr.mxu0 0.0
      %726 = vmatpush1.msra.mxu0 0.0
      %727 = vmatprep.subr.mxu0 0.0
      %728 = vmatpush1.msra.mxu0 0.0
      %729 = vmatprep.subr.mxu0 0.0
      %730 = vmatpush1.msra.mxu0 0.0
      %731 = vmatprep.subr.mxu0 0.0
      %732 = vmatpush1.msra.mxu0 0.0
      %733 = vmatprep.subr.mxu0 0.0
      %734 = vmatpush1.msra.mxu0 0.0
      %735 = vmatprep.subr.mxu0 0.0
      %736 = vmatpush1.msra.mxu0 0.0
      %737 = vmatprep.subr.mxu0 0.0
      %738 = vmatpush1.msra.mxu0 0.0
      %739 = vmatprep.subr.mxu0 0.0
      %740 = vmatpush1.msra.mxu0 0.0
      %741 = vmatprep.subr.mxu0 0.0
      %742 = vmatpush1.msra.mxu0 %v688
      %743 = vmatprep.subr.mxu0 0.0
      %744 = vmatpush1.msra.mxu0 %v687
      %745 = vmatprep.subr.mxu0 0.0
      %746 = vmatpush2.msra.mxu0 0.0
      %747 = vmatprep.subr.mxu0 0.0
      %748 = vmatpush2.msra.mxu0 0.0
      %749 = vmatprep.subr.mxu0 0.0
      %750 = vmatpush2.msra.mxu0 0.0
      %751 = vmatprep.subr.mxu0 0.0
      %752 = vmatpush2.msra.mxu0 0.0
      %753 = vmatprep.subr.mxu0 0.0
      %754 = vmatpush2.msra.mxu0 0.0
      %755 = vmatprep.subr.mxu0 0.0
      %756 = vmatpush2.msra.mxu0 0.0
      %757 = vmatprep.subr.mxu0 0.0
      %758 = vmatpush2.msra.mxu0 0.0
      %759 = vmatprep.subr.mxu0 0.0
      %760 = vmatpush2.msra.mxu0 0.0
      %761 = vmatprep.subr.mxu0 0.0
      %762 = vmatpush2.msra.mxu0 0.0
      %763 = vmatprep.subr.mxu0 0.0
      %764 = vmatpush2.msra.mxu0 0.0
      %765 = vmatprep.subr.mxu0 0.0
      %766 = vmatpush2.msra.mxu0 0.0
      %767 = vmatprep.subr.mxu0 0.0
      %768 = vmatpush2.msra.mxu0 0.0
      %769 = vmatprep.subr.mxu0 0.0
      %770 = vmatpush2.msra.mxu0 0.0
      %771 = vmatprep.subr.mxu0 0.0
      %772 = vmatpush2.msra.mxu0 0.0
      %773 = vmatprep.subr.mxu0 0.0
      %774 = vmatpush2.msra.mxu0 0.0
      %775 = vmatprep.subr.mxu0 0.0
      %776 = vmatpush2.msra.mxu0 0.0
      %777 = vmatprep.mubr.f32.mxu0 0.0
      %778 = vmatmul.mubr.f32.gmra.mxu0 %v690
      %v779 = vpop.f32.mrf.mxu0
      %v780 = vadd.f32 0.0, %v779
      %v781 = vpop.f32.mrf.mxu0
      %782 = vmatprep.mubr.f32.mxu0 0.0
      %783 = vmatmul.mubr.f32.gmra.mxu0 %v693
      %v784 = vpop.f32.mrf.mxu0
      %v785 = vadd.f32 0.0, %v784
      %v786 = vpop.f32.mrf.mxu0
      %787 = vmatprep.mubr.f32.mxu0 0.0
      %788 = vmatmul.mubr.f32.gmra.mxu0 %v696
      %v789 = vpop.f32.mrf.mxu0
      %v790 = vadd.f32 0.0, %v789
      %v791 = vpop.f32.mrf.mxu0
      %792 = vmatprep.mubr.f32.mxu0 0.0
      %793 = vmatmul.mubr.f32.gmra.mxu0 %v699
      %v794 = vpop.f32.mrf.mxu0
      %v795 = vadd.f32 0.0, %v794
      %v796 = vpop.f32.mrf.mxu0
      %797 = vmatprep.mubr.f32.mxu0 0.0
      %798 = vmatmul.mubr.f32.gmra.mxu0 %v702
      %v799 = vpop.f32.mrf.mxu0
      %v800 = vadd.f32 0.0, %v799
      %v801 = vpop.f32.mrf.mxu0
      %802 = vmatprep.mubr.f32.mxu0 0.0
      %803 = vmatmul.mubr.f32.gmra.mxu0 %v705
      %v804 = vpop.f32.mrf.mxu0
      %v805 = vadd.f32 0.0, %v804
      %v806 = vpop.f32.mrf.mxu0
      %807 = vmatprep.mubr.f32.mxu0 0.0
      %808 = vmatmul.mubr.f32.gmra.mxu0 %v708
      %v809 = vpop.f32.mrf.mxu0
      %v810 = vadd.f32 0.0, %v809
      %v811 = vpop.f32.mrf.mxu0
      %812 = vmatprep.mubr.f32.mxu0 0.0
      %813 = vmatmul.mubr.f32.gmra.mxu0 %v711
      %v814 = vpop.f32.mrf.mxu0
      %v815 = vadd.f32 0.0, %v814
      %v816 = vpop.f32.mrf.mxu0
      %817 = vdwg.mxu0
      %v818 = vadd.f32 %v640, %v780
      %v819 = vadd.f32 %v645, %v785
      %v820 = vadd.f32 %v650, %v790
      %v821 = vadd.f32 %v655, %v795
      %v822 = vadd.f32 %v660, %v800
      %v823 = vadd.f32 %v665, %v805
      %v824 = vadd.f32 %v670, %v810
      %v825 = vadd.f32 %v675, %v815
      %s826 = scalar_lea.vmem %s371, 24
      %v827 = vld [vmem:[%s826] sm:$0xff]
      %v828 = vld [vmem:[%s826 + $0x8] sm:$0xff]
      %v829 = vld [vmem:[%s826 + $0x18] sm:$0xff]
      %v830 = vld [vmem:[%s826 + $0x20] sm:$0xff]
      %v831 = vld [vmem:[%s826 + $0x30] sm:$0xff]
      %v832 = vld [vmem:[%s826 + $0x38] sm:$0xff]
      %v833 = vld [vmem:[%s826 + $0x48] sm:$0xff]
      %v834 = vld [vmem:[%s826 + $0x50] sm:$0xff]
      %s835 = scalar_lea.vmem %s1, 48
      %v836 = vld [vmem:[%s835] sm:$0xff]
      %v837 = vld [vmem:[%s835 + $0x8] sm:$0xff]
      %v839 = vsel %vm419, %v827, 0
      %v842 = vsel %vm419, %v828, 0
      %v845 = vsel %vm419, %v829, 0
      %v848 = vsel %vm419, %v830, 0
      %v851 = vsel %vm419, %v831, 0
      %v854 = vsel %vm419, %v832, 0
      %v857 = vsel %vm419, %v833, 0
      %v860 = vsel %vm419, %v834, 0
      %862 = vmatprep.subr.mxu0 0.0
      %863 = vmatpush1.msra.mxu0 0.0
      %864 = vmatprep.subr.mxu0 0.0
      %865 = vmatpush1.msra.mxu0 0.0
      %866 = vmatprep.subr.mxu0 0.0
      %867 = vmatpush1.msra.mxu0 0.0
      %868 = vmatprep.subr.mxu0 0.0
      %869 = vmatpush1.msra.mxu0 0.0
      %870 = vmatprep.subr.mxu0 0.0
      %871 = vmatpush1.msra.mxu0 0.0
      %872 = vmatprep.subr.mxu0 0.0
      %873 = vmatpush1.msra.mxu0 0.0
      %874 = vmatprep.subr.mxu0 0.0
      %875 = vmatpush1.msra.mxu0 0.0
      %876 = vmatprep.subr.mxu0 0.0
      %877 = vmatpush1.msra.mxu0 0.0
      %878 = vmatprep.subr.mxu0 0.0
      %879 = vmatpush1.msra.mxu0 0.0
      %880 = vmatprep.subr.mxu0 0.0
      %881 = vmatpush1.msra.mxu0 0.0
      %882 = vmatprep.subr.mxu0 0.0
      %883 = vmatpush1.msra.mxu0 0.0
      %884 = vmatprep.subr.mxu0 0.0
      %885 = vmatpush1.msra.mxu0 0.0
      %886 = vmatprep.subr.mxu0 0.0
      %887 = vmatpush1.msra.mxu0 0.0
      %888 = vmatprep.subr.mxu0 0.0
      %889 = vmatpush1.msra.mxu0 0.0
      %890 = vmatprep.subr.mxu0 0.0
      %891 = vmatpush1.msra.mxu0 %v837
      %892 = vmatprep.subr.mxu0 0.0
      %893 = vmatpush1.msra.mxu0 %v836
      %894 = vmatprep.subr.mxu0 0.0
      %895 = vmatpush2.msra.mxu0 0.0
      %896 = vmatprep.subr.mxu0 0.0
      %897 = vmatpush2.msra.mxu0 0.0
      %898 = vmatprep.subr.mxu0 0.0
      %899 = vmatpush2.msra.mxu0 0.0
      %900 = vmatprep.subr.mxu0 0.0
      %901 = vmatpush2.msra.mxu0 0.0
      %902 = vmatprep.subr.mxu0 0.0
      %903 = vmatpush2.msra.mxu0 0.0
      %904 = vmatprep.subr.mxu0 0.0
      %905 = vmatpush2.msra.mxu0 0.0
      %906 = vmatprep.subr.mxu0 0.0
      %907 = vmatpush2.msra.mxu0 0.0
      %908 = vmatprep.subr.mxu0 0.0
      %909 = vmatpush2.msra.mxu0 0.0
      %910 = vmatprep.subr.mxu0 0.0
      %911 = vmatpush2.msra.mxu0 0.0
      %912 = vmatprep.subr.mxu0 0.0
      %913 = vmatpush2.msra.mxu0 0.0
      %914 = vmatprep.subr.mxu0 0.0
      %915 = vmatpush2.msra.mxu0 0.0
      %916 = vmatprep.subr.mxu0 0.0
      %917 = vmatpush2.msra.mxu0 0.0
      %918 = vmatprep.subr.mxu0 0.0
      %919 = vmatpush2.msra.mxu0 0.0
      %920 = vmatprep.subr.mxu0 0.0
      %921 = vmatpush2.msra.mxu0 0.0
      %922 = vmatprep.subr.mxu0 0.0
      %923 = vmatpush2.msra.mxu0 0.0
      %924 = vmatprep.subr.mxu0 0.0
      %925 = vmatpush2.msra.mxu0 0.0
      %926 = vmatprep.mubr.f32.mxu0 0.0
      %927 = vmatmul.mubr.f32.gmra.mxu0 %v839
      %v928 = vpop.f32.mrf.mxu0
      %v929 = vadd.f32 0.0, %v928
      %v930 = vpop.f32.mrf.mxu0
      %931 = vmatprep.mubr.f32.mxu0 0.0
      %932 = vmatmul.mubr.f32.gmra.mxu0 %v842
      %v933 = vpop.f32.mrf.mxu0
      %v934 = vadd.f32 0.0, %v933
      %v935 = vpop.f32.mrf.mxu0
      %936 = vmatprep.mubr.f32.mxu0 0.0
      %937 = vmatmul.mubr.f32.gmra.mxu0 %v845
      %v938 = vpop.f32.mrf.mxu0
      %v939 = vadd.f32 0.0, %v938
      %v940 = vpop.f32.mrf.mxu0
      %941 = vmatprep.mubr.f32.mxu0 0.0
      %942 = vmatmul.mubr.f32.gmra.mxu0 %v848
      %v943 = vpop.f32.mrf.mxu0
      %v944 = vadd.f32 0.0, %v943
      %v945 = vpop.f32.mrf.mxu0
      %946 = vmatprep.mubr.f32.mxu0 0.0
      %947 = vmatmul.mubr.f32.gmra.mxu0 %v851
      %v948 = vpop.f32.mrf.mxu0
      %v949 = vadd.f32 0.0, %v948
      %v950 = vpop.f32.mrf.mxu0
      %951 = vmatprep.mubr.f32.mxu0 0.0
      %952 = vmatmul.mubr.f32.gmra.mxu0 %v854
      %v953 = vpop.f32.mrf.mxu0
      %v954 = vadd.f32 0.0, %v953
      %v955 = vpop.f32.mrf.mxu0
      %956 = vmatprep.mubr.f32.mxu0 0.0
      %957 = vmatmul.mubr.f32.gmra.mxu0 %v857
      %v958 = vpop.f32.mrf.mxu0
      %v959 = vadd.f32 0.0, %v958
      %v960 = vpop.f32.mrf.mxu0
      %961 = vmatprep.mubr.f32.mxu0 0.0
      %962 = vmatmul.mubr.f32.gmra.mxu0 %v860
      %v963 = vpop.f32.mrf.mxu0
      %v964 = vadd.f32 0.0, %v963
      %v965 = vpop.f32.mrf.mxu0
      %966 = vdwg.mxu0
      %v967 = vadd.f32 %v818, %v929
      %v968 = vadd.f32 %v819, %v934
      %v969 = vadd.f32 %v820, %v939
      %v970 = vadd.f32 %v821, %v944
      %v971 = vadd.f32 %v822, %v949
      %v972 = vadd.f32 %v823, %v954
      %v973 = vadd.f32 %v824, %v959
      %v974 = vadd.f32 %v825, %v964
      %v975 = vld [vmem:[%s826 + $0x1] sm:$0xff]
      %v976 = vld [vmem:[%s826 + $0x9] sm:$0xff]
      %v977 = vld [vmem:[%s826 + $0x19] sm:$0xff]
      %v978 = vld [vmem:[%s826 + $0x21] sm:$0xff]
      %v979 = vld [vmem:[%s826 + $0x31] sm:$0xff]
      %v980 = vld [vmem:[%s826 + $0x39] sm:$0xff]
      %v981 = vld [vmem:[%s826 + $0x49] sm:$0xff]
      %v982 = vld [vmem:[%s826 + $0x51] sm:$0xff]
      %s983 = scalar_lea.vmem %s1, 64
      %v984 = vld [vmem:[%s983] sm:$0xff]
      %v985 = vld [vmem:[%s983 + $0x8] sm:$0xff]
      %v987 = vsel %vm419, %v975, 0
      %v990 = vsel %vm419, %v976, 0
      %v993 = vsel %vm419, %v977, 0
      %v996 = vsel %vm419, %v978, 0
      %v999 = vsel %vm419, %v979, 0
      %v1002 = vsel %vm419, %v980, 0
      %v1005 = vsel %vm419, %v981, 0
      %v1008 = vsel %vm419, %v982, 0
      %1010 = vmatprep.subr.mxu0 0.0
      %1011 = vmatpush1.msra.mxu0 0.0
      %1012 = vmatprep.subr.mxu0 0.0
      %1013 = vmatpush1.msra.mxu0 0.0
      %1014 = vmatprep.subr.mxu0 0.0
      %1015 = vmatpush1.msra.mxu0 0.0
      %1016 = vmatprep.subr.mxu0 0.0
      %1017 = vmatpush1.msra.mxu0 0.0
      %1018 = vmatprep.subr.mxu0 0.0
      %1019 = vmatpush1.msra.mxu0 0.0
      %1020 = vmatprep.subr.mxu0 0.0
      %1021 = vmatpush1.msra.mxu0 0.0
      %1022 = vmatprep.subr.mxu0 0.0
      %1023 = vmatpush1.msra.mxu0 0.0
      %1024 = vmatprep.subr.mxu0 0.0
      %1025 = vmatpush1.msra.mxu0 0.0
      %1026 = vmatprep.subr.mxu0 0.0
      %1027 = vmatpush1.msra.mxu0 0.0
      %1028 = vmatprep.subr.mxu0 0.0
      %1029 = vmatpush1.msra.mxu0 0.0
      %1030 = vmatprep.subr.mxu0 0.0
      %1031 = vmatpush1.msra.mxu0 0.0
      %1032 = vmatprep.subr.mxu0 0.0
      %1033 = vmatpush1.msra.mxu0 0.0
      %1034 = vmatprep.subr.mxu0 0.0
      %1035 = vmatpush1.msra.mxu0 0.0
      %1036 = vmatprep.subr.mxu0 0.0
      %1037 = vmatpush1.msra.mxu0 0.0
      %1038 = vmatprep.subr.mxu0 0.0
      %1039 = vmatpush1.msra.mxu0 %v985
      %1040 = vmatprep.subr.mxu0 0.0
      %1041 = vmatpush1.msra.mxu0 %v984
      %1042 = vmatprep.subr.mxu0 0.0
      %1043 = vmatpush2.msra.mxu0 0.0
      %1044 = vmatprep.subr.mxu0 0.0
      %1045 = vmatpush2.msra.mxu0 0.0
      %1046 = vmatprep.subr.mxu0 0.0
      %1047 = vmatpush2.msra.mxu0 0.0
      %1048 = vmatprep.subr.mxu0 0.0
      %1049 = vmatpush2.msra.mxu0 0.0
      %1050 = vmatprep.subr.mxu0 0.0
      %1051 = vmatpush2.msra.mxu0 0.0
      %1052 = vmatprep.subr.mxu0 0.0
      %1053 = vmatpush2.msra.mxu0 0.0
      %1054 = vmatprep.subr.mxu0 0.0
      %1055 = vmatpush2.msra.mxu0 0.0
      %1056 = vmatprep.subr.mxu0 0.0
      %1057 = vmatpush2.msra.mxu0 0.0
      %1058 = vmatprep.subr.mxu0 0.0
      %1059 = vmatpush2.msra.mxu0 0.0
      %1060 = vmatprep.subr.mxu0 0.0
      %1061 = vmatpush2.msra.mxu0 0.0
      %1062 = vmatprep.subr.mxu0 0.0
      %1063 = vmatpush2.msra.mxu0 0.0
      %1064 = vmatprep.subr.mxu0 0.0
      %1065 = vmatpush2.msra.mxu0 0.0
      %1066 = vmatprep.subr.mxu0 0.0
      %1067 = vmatpush2.msra.mxu0 0.0
      %1068 = vmatprep.subr.mxu0 0.0
      %1069 = vmatpush2.msra.mxu0 0.0
      %1070 = vmatprep.subr.mxu0 0.0
      %1071 = vmatpush2.msra.mxu0 0.0
      %1072 = vmatprep.subr.mxu0 0.0
      %1073 = vmatpush2.msra.mxu0 0.0
      %1074 = vmatprep.mubr.f32.mxu0 0.0
      %1075 = vmatmul.mubr.f32.gmra.mxu0 %v987
      %v1076 = vpop.f32.mrf.mxu0
      %v1077 = vadd.f32 0.0, %v1076
      %v1078 = vpop.f32.mrf.mxu0
      %1079 = vmatprep.mubr.f32.mxu0 0.0
      %1080 = vmatmul.mubr.f32.gmra.mxu0 %v990
      %v1081 = vpop.f32.mrf.mxu0
      %v1082 = vadd.f32 0.0, %v1081
      %v1083 = vpop.f32.mrf.mxu0
      %1084 = vmatprep.mubr.f32.mxu0 0.0
      %1085 = vmatmul.mubr.f32.gmra.mxu0 %v993
      %v1086 = vpop.f32.mrf.mxu0
      %v1087 = vadd.f32 0.0, %v1086
      %v1088 = vpop.f32.mrf.mxu0
      %1089 = vmatprep.mubr.f32.mxu0 0.0
      %1090 = vmatmul.mubr.f32.gmra.mxu0 %v996
      %v1091 = vpop.f32.mrf.mxu0
      %v1092 = vadd.f32 0.0, %v1091
      %v1093 = vpop.f32.mrf.mxu0
      %1094 = vmatprep.mubr.f32.mxu0 0.0
      %1095 = vmatmul.mubr.f32.gmra.mxu0 %v999
      %v1096 = vpop.f32.mrf.mxu0
      %v1097 = vadd.f32 0.0, %v1096
      %v1098 = vpop.f32.mrf.mxu0
      %1099 = vmatprep.mubr.f32.mxu0 0.0
      %1100 = vmatmul.mubr.f32.gmra.mxu0 %v1002
      %v1101 = vpop.f32.mrf.mxu0
      %v1102 = vadd.f32 0.0, %v1101
      %v1103 = vpop.f32.mrf.mxu0
      %1104 = vmatprep.mubr.f32.mxu0 0.0
      %1105 = vmatmul.mubr.f32.gmra.mxu0 %v1005
      %v1106 = vpop.f32.mrf.mxu0
      %v1107 = vadd.f32 0.0, %v1106
      %v1108 = vpop.f32.mrf.mxu0
      %1109 = vmatprep.mubr.f32.mxu0 0.0
      %1110 = vmatmul.mubr.f32.gmra.mxu0 %v1008
      %v1111 = vpop.f32.mrf.mxu0
      %v1112 = vadd.f32 0.0, %v1111
      %v1113 = vpop.f32.mrf.mxu0
      %1114 = vdwg.mxu0
      %v1115 = vadd.f32 %v967, %v1077
      %v1116 = vadd.f32 %v968, %v1082
      %v1117 = vadd.f32 %v969, %v1087
      %v1118 = vadd.f32 %v970, %v1092
      %v1119 = vadd.f32 %v971, %v1097
      %v1120 = vadd.f32 %v972, %v1102
      %v1121 = vadd.f32 %v973, %v1107
      %v1122 = vadd.f32 %v974, %v1112
      %v1123 = vld [vmem:[%s826 + $0x2] sm:$0xff]
      %v1124 = vld [vmem:[%s826 + $0xa] sm:$0xff]
      %v1125 = vld [vmem:[%s826 + $0x1a] sm:$0xff]
      %v1126 = vld [vmem:[%s826 + $0x22] sm:$0xff]
      %v1127 = vld [vmem:[%s826 + $0x32] sm:$0xff]
      %v1128 = vld [vmem:[%s826 + $0x3a] sm:$0xff]
      %v1129 = vld [vmem:[%s826 + $0x4a] sm:$0xff]
      %v1130 = vld [vmem:[%s826 + $0x52] sm:$0xff]
      %s1131 = scalar_lea.vmem %s1, 80
      %v1132 = vld [vmem:[%s1131] sm:$0xff]
      %v1133 = vld [vmem:[%s1131 + $0x8] sm:$0xff]
      %v1135 = vsel %vm419, %v1123, 0
      %v1138 = vsel %vm419, %v1124, 0
      %v1141 = vsel %vm419, %v1125, 0
      %v1144 = vsel %vm419, %v1126, 0
      %v1147 = vsel %vm419, %v1127, 0
      %v1150 = vsel %vm419, %v1128, 0
      %v1153 = vsel %vm419, %v1129, 0
      %v1156 = vsel %vm419, %v1130, 0
      %1158 = vmatprep.subr.mxu0 0.0
      %1159 = vmatpush1.msra.mxu0 0.0
      %1160 = vmatprep.subr.mxu0 0.0
      %1161 = vmatpush1.msra.mxu0 0.0
      %1162 = vmatprep.subr.mxu0 0.0
      %1163 = vmatpush1.msra.mxu0 0.0
      %1164 = vmatprep.subr.mxu0 0.0
      %1165 = vmatpush1.msra.mxu0 0.0
      %1166 = vmatprep.subr.mxu0 0.0
      %1167 = vmatpush1.msra.mxu0 0.0
      %1168 = vmatprep.subr.mxu0 0.0
      %1169 = vmatpush1.msra.mxu0 0.0
      %1170 = vmatprep.subr.mxu0 0.0
      %1171 = vmatpush1.msra.mxu0 0.0
      %1172 = vmatprep.subr.mxu0 0.0
      %1173 = vmatpush1.msra.mxu0 0.0
      %1174 = vmatprep.subr.mxu0 0.0
      %1175 = vmatpush1.msra.mxu0 0.0
      %1176 = vmatprep.subr.mxu0 0.0
      %1177 = vmatpush1.msra.mxu0 0.0
      %1178 = vmatprep.subr.mxu0 0.0
      %1179 = vmatpush1.msra.mxu0 0.0
      %1180 = vmatprep.subr.mxu0 0.0
      %1181 = vmatpush1.msra.mxu0 0.0
      %1182 = vmatprep.subr.mxu0 0.0
      %1183 = vmatpush1.msra.mxu0 0.0
      %1184 = vmatprep.subr.mxu0 0.0
      %1185 = vmatpush1.msra.mxu0 0.0
      %1186 = vmatprep.subr.mxu0 0.0
      %1187 = vmatpush1.msra.mxu0 %v1133
      %1188 = vmatprep.subr.mxu0 0.0
      %1189 = vmatpush1.msra.mxu0 %v1132
      %1190 = vmatprep.subr.mxu0 0.0
      %1191 = vmatpush2.msra.mxu0 0.0
      %1192 = vmatprep.subr.mxu0 0.0
      %1193 = vmatpush2.msra.mxu0 0.0
      %1194 = vmatprep.subr.mxu0 0.0
      %1195 = vmatpush2.msra.mxu0 0.0
      %1196 = vmatprep.subr.mxu0 0.0
      %1197 = vmatpush2.msra.mxu0 0.0
      %1198 = vmatprep.subr.mxu0 0.0
      %1199 = vmatpush2.msra.mxu0 0.0
      %1200 = vmatprep.subr.mxu0 0.0
      %1201 = vmatpush2.msra.mxu0 0.0
      %1202 = vmatprep.subr.mxu0 0.0
      %1203 = vmatpush2.msra.mxu0 0.0
      %1204 = vmatprep.subr.mxu0 0.0
      %1205 = vmatpush2.msra.mxu0 0.0
      %1206 = vmatprep.subr.mxu0 0.0
      %1207 = vmatpush2.msra.mxu0 0.0
      %1208 = vmatprep.subr.mxu0 0.0
      %1209 = vmatpush2.msra.mxu0 0.0
      %1210 = vmatprep.subr.mxu0 0.0
      %1211 = vmatpush2.msra.mxu0 0.0
      %1212 = vmatprep.subr.mxu0 0.0
      %1213 = vmatpush2.msra.mxu0 0.0
      %1214 = vmatprep.subr.mxu0 0.0
      %1215 = vmatpush2.msra.mxu0 0.0
      %1216 = vmatprep.subr.mxu0 0.0
      %1217 = vmatpush2.msra.mxu0 0.0
      %1218 = vmatprep.subr.mxu0 0.0
      %1219 = vmatpush2.msra.mxu0 0.0
      %1220 = vmatprep.subr.mxu0 0.0
      %1221 = vmatpush2.msra.mxu0 0.0
      %1222 = vmatprep.mubr.f32.mxu0 0.0
      %1223 = vmatmul.mubr.f32.gmra.mxu0 %v1135
      %v1224 = vpop.f32.mrf.mxu0
      %v1225 = vadd.f32 0.0, %v1224
      %v1226 = vpop.f32.mrf.mxu0
      %1227 = vmatprep.mubr.f32.mxu0 0.0
      %1228 = vmatmul.mubr.f32.gmra.mxu0 %v1138
      %v1229 = vpop.f32.mrf.mxu0
      %v1230 = vadd.f32 0.0, %v1229
      %v1231 = vpop.f32.mrf.mxu0
      %1232 = vmatprep.mubr.f32.mxu0 0.0
      %1233 = vmatmul.mubr.f32.gmra.mxu0 %v1141
      %v1234 = vpop.f32.mrf.mxu0
      %v1235 = vadd.f32 0.0, %v1234
      %v1236 = vpop.f32.mrf.mxu0
      %1237 = vmatprep.mubr.f32.mxu0 0.0
      %1238 = vmatmul.mubr.f32.gmra.mxu0 %v1144
      %v1239 = vpop.f32.mrf.mxu0
      %v1240 = vadd.f32 0.0, %v1239
      %v1241 = vpop.f32.mrf.mxu0
      %1242 = vmatprep.mubr.f32.mxu0 0.0
      %1243 = vmatmul.mubr.f32.gmra.mxu0 %v1147
      %v1244 = vpop.f32.mrf.mxu0
      %v1245 = vadd.f32 0.0, %v1244
      %v1246 = vpop.f32.mrf.mxu0
      %1247 = vmatprep.mubr.f32.mxu0 0.0
      %1248 = vmatmul.mubr.f32.gmra.mxu0 %v1150
      %v1249 = vpop.f32.mrf.mxu0
      %v1250 = vadd.f32 0.0, %v1249
      %v1251 = vpop.f32.mrf.mxu0
      %1252 = vmatprep.mubr.f32.mxu0 0.0
      %1253 = vmatmul.mubr.f32.gmra.mxu0 %v1153
      %v1254 = vpop.f32.mrf.mxu0
      %v1255 = vadd.f32 0.0, %v1254
      %v1256 = vpop.f32.mrf.mxu0
      %1257 = vmatprep.mubr.f32.mxu0 0.0
      %1258 = vmatmul.mubr.f32.gmra.mxu0 %v1156
      %v1259 = vpop.f32.mrf.mxu0
      %v1260 = vadd.f32 0.0, %v1259
      %v1261 = vpop.f32.mrf.mxu0
      %1262 = vdwg.mxu0
      %v1263 = vadd.f32 %v1115, %v1225
      %v1264 = vadd.f32 %v1116, %v1230
      %v1265 = vadd.f32 %v1117, %v1235
      %v1266 = vadd.f32 %v1118, %v1240
      %v1267 = vadd.f32 %v1119, %v1245
      %v1268 = vadd.f32 %v1120, %v1250
      %v1269 = vadd.f32 %v1121, %v1255
      %v1270 = vadd.f32 %v1122, %v1260
      %s1271 = scalar_lea.vmem %s371, 48
      %v1272 = vld [vmem:[%s1271] sm:$0xff]
      %v1273 = vld [vmem:[%s1271 + $0x8] sm:$0xff]
      %v1274 = vld [vmem:[%s1271 + $0x18] sm:$0xff]
      %v1275 = vld [vmem:[%s1271 + $0x20] sm:$0xff]
      %v1276 = vld [vmem:[%s1271 + $0x30] sm:$0xff]
      %v1277 = vld [vmem:[%s1271 + $0x38] sm:$0xff]
      %v1278 = vld [vmem:[%s1271 + $0x48] sm:$0xff]
      %v1279 = vld [vmem:[%s1271 + $0x50] sm:$0xff]
      %s1280 = scalar_lea.vmem %s1, 96
      %v1281 = vld [vmem:[%s1280] sm:$0xff]
      %v1282 = vld [vmem:[%s1280 + $0x8] sm:$0xff]
      %v1284 = vsel %vm419, %v1272, 0
      %v1287 = vsel %vm419, %v1273, 0
      %v1290 = vsel %vm419, %v1274, 0
      %v1293 = vsel %vm419, %v1275, 0
      %v1296 = vsel %vm419, %v1276, 0
      %v1299 = vsel %vm419, %v1277, 0
      %v1302 = vsel %vm419, %v1278, 0
      %v1305 = vsel %vm419, %v1279, 0
      %1307 = vmatprep.subr.mxu0 0.0
      %1308 = vmatpush1.msra.mxu0 0.0
      %1309 = vmatprep.subr.mxu0 0.0
      %1310 = vmatpush1.msra.mxu0 0.0
      %1311 = vmatprep.subr.mxu0 0.0
      %1312 = vmatpush1.msra.mxu0 0.0
      %1313 = vmatprep.subr.mxu0 0.0
      %1314 = vmatpush1.msra.mxu0 0.0
      %1315 = vmatprep.subr.mxu0 0.0
      %1316 = vmatpush1.msra.mxu0 0.0
      %1317 = vmatprep.subr.mxu0 0.0
      %1318 = vmatpush1.msra.mxu0 0.0
      %1319 = vmatprep.subr.mxu0 0.0
      %1320 = vmatpush1.msra.mxu0 0.0
      %1321 = vmatprep.subr.mxu0 0.0
      %1322 = vmatpush1.msra.mxu0 0.0
      %1323 = vmatprep.subr.mxu0 0.0
      %1324 = vmatpush1.msra.mxu0 0.0
      %1325 = vmatprep.subr.mxu0 0.0
      %1326 = vmatpush1.msra.mxu0 0.0
      %1327 = vmatprep.subr.mxu0 0.0
      %1328 = vmatpush1.msra.mxu0 0.0
      %1329 = vmatprep.subr.mxu0 0.0
      %1330 = vmatpush1.msra.mxu0 0.0
      %1331 = vmatprep.subr.mxu0 0.0
      %1332 = vmatpush1.msra.mxu0 0.0
      %1333 = vmatprep.subr.mxu0 0.0
      %1334 = vmatpush1.msra.mxu0 0.0
      %1335 = vmatprep.subr.mxu0 0.0
      %1336 = vmatpush1.msra.mxu0 %v1282
      %1337 = vmatprep.subr.mxu0 0.0
      %1338 = vmatpush1.msra.mxu0 %v1281
      %1339 = vmatprep.subr.mxu0 0.0
      %1340 = vmatpush2.msra.mxu0 0.0
      %1341 = vmatprep.subr.mxu0 0.0
      %1342 = vmatpush2.msra.mxu0 0.0
      %1343 = vmatprep.subr.mxu0 0.0
      %1344 = vmatpush2.msra.mxu0 0.0
      %1345 = vmatprep.subr.mxu0 0.0
      %1346 = vmatpush2.msra.mxu0 0.0
      %1347 = vmatprep.subr.mxu0 0.0
      %1348 = vmatpush2.msra.mxu0 0.0
      %1349 = vmatprep.subr.mxu0 0.0
      %1350 = vmatpush2.msra.mxu0 0.0
      %1351 = vmatprep.subr.mxu0 0.0
      %1352 = vmatpush2.msra.mxu0 0.0
      %1353 = vmatprep.subr.mxu0 0.0
      %1354 = vmatpush2.msra.mxu0 0.0
      %1355 = vmatprep.subr.mxu0 0.0
      %1356 = vmatpush2.msra.mxu0 0.0
      %1357 = vmatprep.subr.mxu0 0.0
      %1358 = vmatpush2.msra.mxu0 0.0
      %1359 = vmatprep.subr.mxu0 0.0
      %1360 = vmatpush2.msra.mxu0 0.0
      %1361 = vmatprep.subr.mxu0 0.0
      %1362 = vmatpush2.msra.mxu0 0.0
      %1363 = vmatprep.subr.mxu0 0.0
      %1364 = vmatpush2.msra.mxu0 0.0
      %1365 = vmatprep.subr.mxu0 0.0
      %1366 = vmatpush2.msra.mxu0 0.0
      %1367 = vmatprep.subr.mxu0 0.0
      %1368 = vmatpush2.msra.mxu0 0.0
      %1369 = vmatprep.subr.mxu0 0.0
      %1370 = vmatpush2.msra.mxu0 0.0
      %1371 = vmatprep.mubr.f32.mxu0 0.0
      %1372 = vmatmul.mubr.f32.gmra.mxu0 %v1284
      %v1373 = vpop.f32.mrf.mxu0
      %v1374 = vadd.f32 0.0, %v1373
      %v1375 = vpop.f32.mrf.mxu0
      %1376 = vmatprep.mubr.f32.mxu0 0.0
      %1377 = vmatmul.mubr.f32.gmra.mxu0 %v1287
      %v1378 = vpop.f32.mrf.mxu0
      %v1379 = vadd.f32 0.0, %v1378
      %v1380 = vpop.f32.mrf.mxu0
      %1381 = vmatprep.mubr.f32.mxu0 0.0
      %1382 = vmatmul.mubr.f32.gmra.mxu0 %v1290
      %v1383 = vpop.f32.mrf.mxu0
      %v1384 = vadd.f32 0.0, %v1383
      %v1385 = vpop.f32.mrf.mxu0
      %1386 = vmatprep.mubr.f32.mxu0 0.0
      %1387 = vmatmul.mubr.f32.gmra.mxu0 %v1293
      %v1388 = vpop.f32.mrf.mxu0
      %v1389 = vadd.f32 0.0, %v1388
      %v1390 = vpop.f32.mrf.mxu0
      %1391 = vmatprep.mubr.f32.mxu0 0.0
      %1392 = vmatmul.mubr.f32.gmra.mxu0 %v1296
      %v1393 = vpop.f32.mrf.mxu0
      %v1394 = vadd.f32 0.0, %v1393
      %v1395 = vpop.f32.mrf.mxu0
      %1396 = vmatprep.mubr.f32.mxu0 0.0
      %1397 = vmatmul.mubr.f32.gmra.mxu0 %v1299
      %v1398 = vpop.f32.mrf.mxu0
      %v1399 = vadd.f32 0.0, %v1398
      %v1400 = vpop.f32.mrf.mxu0
      %1401 = vmatprep.mubr.f32.mxu0 0.0
      %1402 = vmatmul.mubr.f32.gmra.mxu0 %v1302
      %v1403 = vpop.f32.mrf.mxu0
      %v1404 = vadd.f32 0.0, %v1403
      %v1405 = vpop.f32.mrf.mxu0
      %1406 = vmatprep.mubr.f32.mxu0 0.0
      %1407 = vmatmul.mubr.f32.gmra.mxu0 %v1305
      %v1408 = vpop.f32.mrf.mxu0
      %v1409 = vadd.f32 0.0, %v1408
      %v1410 = vpop.f32.mrf.mxu0
      %1411 = vdwg.mxu0
      %v1412 = vadd.f32 %v1263, %v1374
      %v1413 = vadd.f32 %v1264, %v1379
      %v1414 = vadd.f32 %v1265, %v1384
      %v1415 = vadd.f32 %v1266, %v1389
      %v1416 = vadd.f32 %v1267, %v1394
      %v1417 = vadd.f32 %v1268, %v1399
      %v1418 = vadd.f32 %v1269, %v1404
      %v1419 = vadd.f32 %v1270, %v1409
      %v1420 = vld [vmem:[%s1271 + $0x1] sm:$0xff]
      %v1421 = vld [vmem:[%s1271 + $0x9] sm:$0xff]
      %v1422 = vld [vmem:[%s1271 + $0x19] sm:$0xff]
      %v1423 = vld [vmem:[%s1271 + $0x21] sm:$0xff]
      %v1424 = vld [vmem:[%s1271 + $0x31] sm:$0xff]
      %v1425 = vld [vmem:[%s1271 + $0x39] sm:$0xff]
      %v1426 = vld [vmem:[%s1271 + $0x49] sm:$0xff]
      %v1427 = vld [vmem:[%s1271 + $0x51] sm:$0xff]
      %s1428 = scalar_lea.vmem %s1, 112
      %v1429 = vld [vmem:[%s1428] sm:$0xff]
      %v1430 = vld [vmem:[%s1428 + $0x8] sm:$0xff]
      %v1432 = vsel %vm419, %v1420, 0
      %v1435 = vsel %vm419, %v1421, 0
      %v1438 = vsel %vm419, %v1422, 0
      %v1441 = vsel %vm419, %v1423, 0
      %v1444 = vsel %vm419, %v1424, 0
      %v1447 = vsel %vm419, %v1425, 0
      %v1450 = vsel %vm419, %v1426, 0
      %v1453 = vsel %vm419, %v1427, 0
      %1455 = vmatprep.subr.mxu0 0.0
      %1456 = vmatpush1.msra.mxu0 0.0
      %1457 = vmatprep.subr.mxu0 0.0
      %1458 = vmatpush1.msra.mxu0 0.0
      %1459 = vmatprep.subr.mxu0 0.0
      %1460 = vmatpush1.msra.mxu0 0.0
      %1461 = vmatprep.subr.mxu0 0.0
      %1462 = vmatpush1.msra.mxu0 0.0
      %1463 = vmatprep.subr.mxu0 0.0
      %1464 = vmatpush1.msra.mxu0 0.0
      %1465 = vmatprep.subr.mxu0 0.0
      %1466 = vmatpush1.msra.mxu0 0.0
      %1467 = vmatprep.subr.mxu0 0.0
      %1468 = vmatpush1.msra.mxu0 0.0
      %1469 = vmatprep.subr.mxu0 0.0
      %1470 = vmatpush1.msra.mxu0 0.0
      %1471 = vmatprep.subr.mxu0 0.0
      %1472 = vmatpush1.msra.mxu0 0.0
      %1473 = vmatprep.subr.mxu0 0.0
      %1474 = vmatpush1.msra.mxu0 0.0
      %1475 = vmatprep.subr.mxu0 0.0
      %1476 = vmatpush1.msra.mxu0 0.0
      %1477 = vmatprep.subr.mxu0 0.0
      %1478 = vmatpush1.msra.mxu0 0.0
      %1479 = vmatprep.subr.mxu0 0.0
      %1480 = vmatpush1.msra.mxu0 0.0
      %1481 = vmatprep.subr.mxu0 0.0
      %1482 = vmatpush1.msra.mxu0 0.0
      %1483 = vmatprep.subr.mxu0 0.0
      %1484 = vmatpush1.msra.mxu0 %v1430
      %1485 = vmatprep.subr.mxu0 0.0
      %1486 = vmatpush1.msra.mxu0 %v1429
      %1487 = vmatprep.subr.mxu0 0.0
      %1488 = vmatpush2.msra.mxu0 0.0
      %1489 = vmatprep.subr.mxu0 0.0
      %1490 = vmatpush2.msra.mxu0 0.0
      %1491 = vmatprep.subr.mxu0 0.0
      %1492 = vmatpush2.msra.mxu0 0.0
      %1493 = vmatprep.subr.mxu0 0.0
      %1494 = vmatpush2.msra.mxu0 0.0
      %1495 = vmatprep.subr.mxu0 0.0
      %1496 = vmatpush2.msra.mxu0 0.0
      %1497 = vmatprep.subr.mxu0 0.0
      %1498 = vmatpush2.msra.mxu0 0.0
      %1499 = vmatprep.subr.mxu0 0.0
      %1500 = vmatpush2.msra.mxu0 0.0
      %1501 = vmatprep.subr.mxu0 0.0
      %1502 = vmatpush2.msra.mxu0 0.0
      %1503 = vmatprep.subr.mxu0 0.0
      %1504 = vmatpush2.msra.mxu0 0.0
      %1505 = vmatprep.subr.mxu0 0.0
      %1506 = vmatpush2.msra.mxu0 0.0
      %1507 = vmatprep.subr.mxu0 0.0
      %1508 = vmatpush2.msra.mxu0 0.0
      %1509 = vmatprep.subr.mxu0 0.0
      %1510 = vmatpush2.msra.mxu0 0.0
      %1511 = vmatprep.subr.mxu0 0.0
      %1512 = vmatpush2.msra.mxu0 0.0
      %1513 = vmatprep.subr.mxu0 0.0
      %1514 = vmatpush2.msra.mxu0 0.0
      %1515 = vmatprep.subr.mxu0 0.0
      %1516 = vmatpush2.msra.mxu0 0.0
      %1517 = vmatprep.subr.mxu0 0.0
      %1518 = vmatpush2.msra.mxu0 0.0
      %1519 = vmatprep.mubr.f32.mxu0 0.0
      %1520 = vmatmul.mubr.f32.gmra.mxu0 %v1432
      %v1521 = vpop.f32.mrf.mxu0
      %v1522 = vadd.f32 0.0, %v1521
      %v1523 = vpop.f32.mrf.mxu0
      %1524 = vmatprep.mubr.f32.mxu0 0.0
      %1525 = vmatmul.mubr.f32.gmra.mxu0 %v1435
      %v1526 = vpop.f32.mrf.mxu0
      %v1527 = vadd.f32 0.0, %v1526
      %v1528 = vpop.f32.mrf.mxu0
      %1529 = vmatprep.mubr.f32.mxu0 0.0
      %1530 = vmatmul.mubr.f32.gmra.mxu0 %v1438
      %v1531 = vpop.f32.mrf.mxu0
      %v1532 = vadd.f32 0.0, %v1531
      %v1533 = vpop.f32.mrf.mxu0
      %1534 = vmatprep.mubr.f32.mxu0 0.0
      %1535 = vmatmul.mubr.f32.gmra.mxu0 %v1441
      %v1536 = vpop.f32.mrf.mxu0
      %v1537 = vadd.f32 0.0, %v1536
      %v1538 = vpop.f32.mrf.mxu0
      %1539 = vmatprep.mubr.f32.mxu0 0.0
      %1540 = vmatmul.mubr.f32.gmra.mxu0 %v1444
      %v1541 = vpop.f32.mrf.mxu0
      %v1542 = vadd.f32 0.0, %v1541
      %v1543 = vpop.f32.mrf.mxu0
      %1544 = vmatprep.mubr.f32.mxu0 0.0
      %1545 = vmatmul.mubr.f32.gmra.mxu0 %v1447
      %v1546 = vpop.f32.mrf.mxu0
      %v1547 = vadd.f32 0.0, %v1546
      %v1548 = vpop.f32.mrf.mxu0
      %1549 = vmatprep.mubr.f32.mxu0 0.0
      %1550 = vmatmul.mubr.f32.gmra.mxu0 %v1450
      %v1551 = vpop.f32.mrf.mxu0
      %v1552 = vadd.f32 0.0, %v1551
      %v1553 = vpop.f32.mrf.mxu0
      %1554 = vmatprep.mubr.f32.mxu0 0.0
      %1555 = vmatmul.mubr.f32.gmra.mxu0 %v1453
      %v1556 = vpop.f32.mrf.mxu0
      %v1557 = vadd.f32 0.0, %v1556
      %v1558 = vpop.f32.mrf.mxu0
      %1559 = vdwg.mxu0
      %v1560 = vadd.f32 %v1412, %v1522
      %v1561 = vadd.f32 %v1413, %v1527
      %v1562 = vadd.f32 %v1414, %v1532
      %v1563 = vadd.f32 %v1415, %v1537
      %v1564 = vadd.f32 %v1416, %v1542
      %v1565 = vadd.f32 %v1417, %v1547
      %v1566 = vadd.f32 %v1418, %v1552
      %v1567 = vadd.f32 %v1419, %v1557
      %v1568 = vld [vmem:[%s1271 + $0x2] sm:$0xff]
      %v1569 = vld [vmem:[%s1271 + $0xa] sm:$0xff]
      %v1570 = vld [vmem:[%s1271 + $0x1a] sm:$0xff]
      %v1571 = vld [vmem:[%s1271 + $0x22] sm:$0xff]
      %v1572 = vld [vmem:[%s1271 + $0x32] sm:$0xff]
      %v1573 = vld [vmem:[%s1271 + $0x3a] sm:$0xff]
      %v1574 = vld [vmem:[%s1271 + $0x4a] sm:$0xff]
      %v1575 = vld [vmem:[%s1271 + $0x52] sm:$0xff]
      %s1576 = scalar_lea.vmem %s1, 128
      %v1577 = vld [vmem:[%s1576] sm:$0xff]
      %v1578 = vld [vmem:[%s1576 + $0x8] sm:$0xff]
      %v1580 = vsel %vm419, %v1568, 0
      %v1583 = vsel %vm419, %v1569, 0
      %v1586 = vsel %vm419, %v1570, 0
      %v1589 = vsel %vm419, %v1571, 0
      %v1592 = vsel %vm419, %v1572, 0
      %v1595 = vsel %vm419, %v1573, 0
      %v1598 = vsel %vm419, %v1574, 0
      %v1601 = vsel %vm419, %v1575, 0
      %1603 = vmatprep.subr.mxu0 0.0
      %1604 = vmatpush1.msra.mxu0 0.0
      %1605 = vmatprep.subr.mxu0 0.0
      %1606 = vmatpush1.msra.mxu0 0.0
      %1607 = vmatprep.subr.mxu0 0.0
      %1608 = vmatpush1.msra.mxu0 0.0
      %1609 = vmatprep.subr.mxu0 0.0
      %1610 = vmatpush1.msra.mxu0 0.0
      %1611 = vmatprep.subr.mxu0 0.0
      %1612 = vmatpush1.msra.mxu0 0.0
      %1613 = vmatprep.subr.mxu0 0.0
      %1614 = vmatpush1.msra.mxu0 0.0
      %1615 = vmatprep.subr.mxu0 0.0
      %1616 = vmatpush1.msra.mxu0 0.0
      %1617 = vmatprep.subr.mxu0 0.0
      %1618 = vmatpush1.msra.mxu0 0.0
      %1619 = vmatprep.subr.mxu0 0.0
      %1620 = vmatpush1.msra.mxu0 0.0
      %1621 = vmatprep.subr.mxu0 0.0
      %1622 = vmatpush1.msra.mxu0 0.0
      %1623 = vmatprep.subr.mxu0 0.0
      %1624 = vmatpush1.msra.mxu0 0.0
      %1625 = vmatprep.subr.mxu0 0.0
      %1626 = vmatpush1.msra.mxu0 0.0
      %1627 = vmatprep.subr.mxu0 0.0
      %1628 = vmatpush1.msra.mxu0 0.0
      %1629 = vmatprep.subr.mxu0 0.0
      %1630 = vmatpush1.msra.mxu0 0.0
      %1631 = vmatprep.subr.mxu0 0.0
      %1632 = vmatpush1.msra.mxu0 %v1578
      %1633 = vmatprep.subr.mxu0 0.0
      %1634 = vmatpush1.msra.mxu0 %v1577
      %1635 = vmatprep.subr.mxu0 0.0
      %1636 = vmatpush2.msra.mxu0 0.0
      %1637 = vmatprep.subr.mxu0 0.0
      %1638 = vmatpush2.msra.mxu0 0.0
      %1639 = vmatprep.subr.mxu0 0.0
      %1640 = vmatpush2.msra.mxu0 0.0
      %1641 = vmatprep.subr.mxu0 0.0
      %1642 = vmatpush2.msra.mxu0 0.0
      %1643 = vmatprep.subr.mxu0 0.0
      %1644 = vmatpush2.msra.mxu0 0.0
      %1645 = vmatprep.subr.mxu0 0.0
      %1646 = vmatpush2.msra.mxu0 0.0
      %1647 = vmatprep.subr.mxu0 0.0
      %1648 = vmatpush2.msra.mxu0 0.0
      %1649 = vmatprep.subr.mxu0 0.0
      %1650 = vmatpush2.msra.mxu0 0.0
      %1651 = vmatprep.subr.mxu0 0.0
      %1652 = vmatpush2.msra.mxu0 0.0
      %1653 = vmatprep.subr.mxu0 0.0
      %1654 = vmatpush2.msra.mxu0 0.0
      %1655 = vmatprep.subr.mxu0 0.0
      %1656 = vmatpush2.msra.mxu0 0.0
      %1657 = vmatprep.subr.mxu0 0.0
      %1658 = vmatpush2.msra.mxu0 0.0
      %1659 = vmatprep.subr.mxu0 0.0
      %1660 = vmatpush2.msra.mxu0 0.0
      %1661 = vmatprep.subr.mxu0 0.0
      %1662 = vmatpush2.msra.mxu0 0.0
      %1663 = vmatprep.subr.mxu0 0.0
      %1664 = vmatpush2.msra.mxu0 0.0
      %1665 = vmatprep.subr.mxu0 0.0
      %1666 = vmatpush2.msra.mxu0 0.0
      %1667 = vmatprep.mubr.f32.mxu0 0.0
      %1668 = vmatmul.mubr.f32.gmra.mxu0 %v1580
      %v1669 = vpop.f32.mrf.mxu0
      %v1670 = vadd.f32 0.0, %v1669
      %v1671 = vpop.f32.mrf.mxu0
      %1672 = vmatprep.mubr.f32.mxu0 0.0
      %1673 = vmatmul.mubr.f32.gmra.mxu0 %v1583
      %v1674 = vpop.f32.mrf.mxu0
      %v1675 = vadd.f32 0.0, %v1674
      %v1676 = vpop.f32.mrf.mxu0
      %1677 = vmatprep.mubr.f32.mxu0 0.0
      %1678 = vmatmul.mubr.f32.gmra.mxu0 %v1586
      %v1679 = vpop.f32.mrf.mxu0
      %v1680 = vadd.f32 0.0, %v1679
      %v1681 = vpop.f32.mrf.mxu0
      %1682 = vmatprep.mubr.f32.mxu0 0.0
      %1683 = vmatmul.mubr.f32.gmra.mxu0 %v1589
      %v1684 = vpop.f32.mrf.mxu0
      %v1685 = vadd.f32 0.0, %v1684
      %v1686 = vpop.f32.mrf.mxu0
      %1687 = vmatprep.mubr.f32.mxu0 0.0
      %1688 = vmatmul.mubr.f32.gmra.mxu0 %v1592
      %v1689 = vpop.f32.mrf.mxu0
      %v1690 = vadd.f32 0.0, %v1689
      %v1691 = vpop.f32.mrf.mxu0
      %1692 = vmatprep.mubr.f32.mxu0 0.0
      %1693 = vmatmul.mubr.f32.gmra.mxu0 %v1595
      %v1694 = vpop.f32.mrf.mxu0
      %v1695 = vadd.f32 0.0, %v1694
      %v1696 = vpop.f32.mrf.mxu0
      %1697 = vmatprep.mubr.f32.mxu0 0.0
      %1698 = vmatmul.mubr.f32.gmra.mxu0 %v1598
      %v1699 = vpop.f32.mrf.mxu0
      %v1700 = vadd.f32 0.0, %v1699
      %v1701 = vpop.f32.mrf.mxu0
      %1702 = vmatprep.mubr.f32.mxu0 0.0
      %1703 = vmatmul.mubr.f32.gmra.mxu0 %v1601
      %v1704 = vpop.f32.mrf.mxu0
      %v1705 = vadd.f32 0.0, %v1704
      %v1706 = vpop.f32.mrf.mxu0
      %1707 = vdwg.mxu0
      %v1708 = vadd.f32 %v1560, %v1670
      %v1709 = vadd.f32 %v1561, %v1675
      %v1710 = vadd.f32 %v1562, %v1680
      %v1711 = vadd.f32 %v1563, %v1685
      %v1712 = vadd.f32 %v1564, %v1690
      %v1713 = vadd.f32 %v1565, %v1695
      %v1714 = vadd.f32 %v1566, %v1700
      %v1715 = vadd.f32 %v1567, %v1705
      %p1716 = scmp.eq.s32.totalorder %s25, 0
      // Predicated region
      $region53: #{fused_conv_gn_pool_residual.1} parent=51 // pred_check
        %p1717 = pneg %p1716
      $region54: #{fused_conv_gn_pool_residual.1} parent=51 // pred_check_branch
        %1719 = sbr.rel (%p1717) target = $region56
      $region55: #{fused_conv_gn_pool_residual.1} parent=51 // pred_region
        %p1720 = scmp.eq.s32.totalorder %s26, 0
        // Predicated region
        $region57: #{fused_conv_gn_pool_residual.1} parent=55 // pred_check
          %p1721 = pneg %p1720
        $region58: #{fused_conv_gn_pool_residual.1} parent=55 // pred_check_branch
          %1723 = sbr.rel (%p1721) target = $region60
        $region59: #{fused_conv_gn_pool_residual.1} parent=55 // pred_region
          %1724 = vst [vmem:[#allocation2] sm:$0x1] 0.0
          %1725 = vst [vmem:[#allocation3] sm:$0x1] 0.0
        $region60: #{fused_conv_gn_pool_residual.1} parent=55 // pred_fallthru
          _
        %v1726 = vld [vmem:[#allocation2] sm:$0x1]
        %v1727 = vadd.f32 %v1708, %v1709
        %v1728 = vadd.f32 %v1727, %v1710
        %v1729 = vadd.f32 %v1728, %v1711
        %v1730 = vadd.f32 %v1729, %v1712
        %v1731 = vadd.f32 %v1730, %v1713
        %v1732 = vadd.f32 %v1731, %v1714
        %v1733 = vadd.f32 %v1732, %v1715
        %v1734 = vrot.slane %v1733, 4
        %v1735 = vadd.f32 %v1733, %v1734
        %v1736 = vrot.slane %v1735, 2
        %v1737 = vadd.f32 %v1735, %v1736
        %v1738 = vrot.slane %v1737, 1
        %v1739 = vadd.f32 %v1737, %v1738
        %v1740 = vadd.f32 %v1726, %v1739
        %1741 = vst [vmem:[#allocation2] sm:$0x1] %v1740
        %v1742 = vld [vmem:[#allocation3] sm:$0x1]
        %v1743 = vmul.f32 %v1708, %v1708
        %v1744 = vmul.f32 %v1709, %v1709
        %v1745 = vmul.f32 %v1710, %v1710
        %v1746 = vmul.f32 %v1711, %v1711
        %v1747 = vmul.f32 %v1712, %v1712
        %v1748 = vmul.f32 %v1713, %v1713
        %v1749 = vmul.f32 %v1714, %v1714
        %v1750 = vmul.f32 %v1715, %v1715
        %v1751 = vadd.f32 %v1743, %v1744
        %v1752 = vadd.f32 %v1751, %v1745
        %v1753 = vadd.f32 %v1752, %v1746
        %v1754 = vadd.f32 %v1753, %v1747
        %v1755 = vadd.f32 %v1754, %v1748
        %v1756 = vadd.f32 %v1755, %v1749
        %v1757 = vadd.f32 %v1756, %v1750
        %v1758 = vrot.slane %v1757, 4
        %v1759 = vadd.f32 %v1757, %v1758
        %v1760 = vrot.slane %v1759, 2
        %v1761 = vadd.f32 %v1759, %v1760
        %v1762 = vrot.slane %v1761, 1
        %v1763 = vadd.f32 %v1761, %v1762
        %v1764 = vadd.f32 %v1742, %v1763
        %1765 = vst [vmem:[#allocation3] sm:$0x1] %v1764
        %p1766 = scmp.eq.s32.totalorder %s26, 3
        // Predicated region
        $region61: #{fused_conv_gn_pool_residual.1} parent=55 // pred_check
          %p1767 = pneg %p1766
        $region62: #{fused_conv_gn_pool_residual.1} parent=55 // pred_check_branch
          %1769 = sbr.rel (%p1767) target = $region64
        $region63: #{fused_conv_gn_pool_residual.1} parent=55 // pred_region
          %v1770 = vld [vmem:[%s2] sm:$0x1]
          %v1771 = vld [vmem:[#allocation2] sm:$0x1]
          %v1772 = vmul.f32 %v1770, 256.0
          %v1773 = vadd.f32 %v1771, %v1772
          %v1774 = vld [vmem:[#allocation3] sm:$0x1]
          %v1775 = vmul.f32 %v1770, 2.0
          %v1776 = vmul.f32 %v1775, %v1771
          %v1777 = vadd.f32 %v1774, %v1776
          %v1778 = vmul.f32 %v1772, %v1770
          %v1779 = vadd.f32 %v1777, %v1778
          %v1780 = vld [vmem:[%s5] sm:$0xff]
          %v1781 = vld [vmem:[%s5 + $0x8] sm:$0xff]
          %v1782 = vld [vmem:[%s5 + $0x10] sm:$0xff]
          %v1783 = vld [vmem:[%s5 + $0x18] sm:$0xff]
          %v1784 = vld [vmem:[%s5 + $0x20] sm:$0xff]
          %v1785 = vld [vmem:[%s5 + $0x28] sm:$0xff]
          %v1786 = vld [vmem:[%s5 + $0x30] sm:$0xff]
          %v1787 = vld [vmem:[%s5 + $0x38] sm:$0xff]
          %v1788 = vld [vmem:[%s5 + $0x40] sm:$0xff]
          %v1789 = vld [vmem:[%s5 + $0x48] sm:$0xff]
          %v1790 = vld [vmem:[%s5 + $0x50] sm:$0xff]
          %v1791 = vld [vmem:[%s5 + $0x58] sm:$0xff]
          %v1792 = vld [vmem:[%s5 + $0x60] sm:$0xff]
          %v1793 = vld [vmem:[%s5 + $0x68] sm:$0xff]
          %v1794 = vld [vmem:[%s5 + $0x70] sm:$0xff]
          %v1795 = vld [vmem:[%s5 + $0x78] sm:$0xff]
          %1796 = vmatprep.subr.mxu0 0.0
          %1797 = vmatpush1.msra.mxu0 %v1795
          %1798 = vmatprep.subr.mxu0 0.0
          %1799 = vmatpush1.msra.mxu0 %v1794
          %1800 = vmatprep.subr.mxu0 0.0
          %1801 = vmatpush1.msra.mxu0 %v1793
          %1802 = vmatprep.subr.mxu0 0.0
          %1803 = vmatpush1.msra.mxu0 %v1792
          %1804 = vmatprep.subr.mxu0 0.0
          %1805 = vmatpush1.msra.mxu0 %v1791
          %1806 = vmatprep.subr.mxu0 0.0
          %1807 = vmatpush1.msra.mxu0 %v1790
          %1808 = vmatprep.subr.mxu0 0.0
          %1809 = vmatpush1.msra.mxu0 %v1789
          %1810 = vmatprep.subr.mxu0 0.0
          %1811 = vmatpush1.msra.mxu0 %v1788
          %1812 = vmatprep.subr.mxu0 0.0
          %1813 = vmatpush1.msra.mxu0 %v1787
          %1814 = vmatprep.subr.mxu0 0.0
          %1815 = vmatpush1.msra.mxu0 %v1786
          %1816 = vmatprep.subr.mxu0 0.0
          %1817 = vmatpush1.msra.mxu0 %v1785
          %1818 = vmatprep.subr.mxu0 0.0
          %1819 = vmatpush1.msra.mxu0 %v1784
          %1820 = vmatprep.subr.mxu0 0.0
          %1821 = vmatpush1.msra.mxu0 %v1783
          %1822 = vmatprep.subr.mxu0 0.0
          %1823 = vmatpush1.msra.mxu0 %v1782
          %1824 = vmatprep.subr.mxu0 0.0
          %1825 = vmatpush1.msra.mxu0 %v1781
          %1826 = vmatprep.subr.mxu0 0.0
          %1827 = vmatpush1.msra.mxu0 %v1780
          %1828 = vmatprep.subr.mxu0 0.0
          %1829 = vmatpush2.msra.mxu0 0.0
          %1830 = vmatprep.subr.mxu0 0.0
          %1831 = vmatpush2.msra.mxu0 0.0
          %1832 = vmatprep.subr.mxu0 0.0
          %1833 = vmatpush2.msra.mxu0 0.0
          %1834 = vmatprep.subr.mxu0 0.0
          %1835 = vmatpush2.msra.mxu0 0.0
          %1836 = vmatprep.subr.mxu0 0.0
          %1837 = vmatpush2.msra.mxu0 0.0
          %1838 = vmatprep.subr.mxu0 0.0
          %1839 = vmatpush2.msra.mxu0 0.0
          %1840 = vmatprep.subr.mxu0 0.0
          %1841 = vmatpush2.msra.mxu0 0.0
          %1842 = vmatprep.subr.mxu0 0.0
          %1843 = vmatpush2.msra.mxu0 0.0
          %1844 = vmatprep.subr.mxu0 0.0
          %1845 = vmatpush2.msra.mxu0 0.0
          %1846 = vmatprep.subr.mxu0 0.0
          %1847 = vmatpush2.msra.mxu0 0.0
          %1848 = vmatprep.subr.mxu0 0.0
          %1849 = vmatpush2.msra.mxu0 0.0
          %1850 = vmatprep.subr.mxu0 0.0
          %1851 = vmatpush2.msra.mxu0 0.0
          %1852 = vmatprep.subr.mxu0 0.0
          %1853 = vmatpush2.msra.mxu0 0.0
          %1854 = vmatprep.subr.mxu0 0.0
          %1855 = vmatpush2.msra.mxu0 0.0
          %1856 = vmatprep.subr.mxu0 0.0
          %1857 = vmatpush2.msra.mxu0 0.0
          %1858 = vmatprep.subr.mxu0 0.0
          %1859 = vmatpush2.msra.mxu0 0.0
          %1860 = vmatprep.mubr.f32.mxu0 0.0
          %1861 = vmatmul.mubr.f32.gmra.mxu0 %v1773
          %v1862 = vpop.f32.mrf.mxu0
          %v1863 = vadd.f32 0.0, %v1862
          %v1864 = vpop.f32.mrf.mxu0
          %1865 = vdwg.mxu0
          %v1866 = vld [vmem:[%s6] sm:$0xff]
          %v1867 = vld [vmem:[%s6 + $0x8] sm:$0xff]
          %v1869 = vsel %vm419, %v1863, 0
          %1871 = vmatprep.subr.mxu0 0.0
          %1872 = vmatpush1.msra.mxu0 0.0
          %1873 = vmatprep.subr.mxu0 0.0
          %1874 = vmatpush1.msra.mxu0 0.0
          %1875 = vmatprep.subr.mxu0 0.0
          %1876 = vmatpush1.msra.mxu0 0.0
          %1877 = vmatprep.subr.mxu0 0.0
          %1878 = vmatpush1.msra.mxu0 0.0
          %1879 = vmatprep.subr.mxu0 0.0
          %1880 = vmatpush1.msra.mxu0 0.0
          %1881 = vmatprep.subr.mxu0 0.0
          %1882 = vmatpush1.msra.mxu0 0.0
          %1883 = vmatprep.subr.mxu0 0.0
          %1884 = vmatpush1.msra.mxu0 0.0
          %1885 = vmatprep.subr.mxu0 0.0
          %1886 = vmatpush1.msra.mxu0 0.0
          %1887 = vmatprep.subr.mxu0 0.0
          %1888 = vmatpush1.msra.mxu0 0.0
          %1889 = vmatprep.subr.mxu0 0.0
          %1890 = vmatpush1.msra.mxu0 0.0
          %1891 = vmatprep.subr.mxu0 0.0
          %1892 = vmatpush1.msra.mxu0 0.0
          %1893 = vmatprep.subr.mxu0 0.0
          %1894 = vmatpush1.msra.mxu0 0.0
          %1895 = vmatprep.subr.mxu0 0.0
          %1896 = vmatpush1.msra.mxu0 0.0
          %1897 = vmatprep.subr.mxu0 0.0
          %1898 = vmatpush1.msra.mxu0 0.0
          %1899 = vmatprep.subr.mxu0 0.0
          %1900 = vmatpush1.msra.mxu0 %v1867
          %1901 = vmatprep.subr.mxu0 0.0
          %1902 = vmatpush1.msra.mxu0 %v1866
          %1903 = vmatprep.subr.mxu0 0.0
          %1904 = vmatpush2.msra.mxu0 0.0
          %1905 = vmatprep.subr.mxu0 0.0
          %1906 = vmatpush2.msra.mxu0 0.0
          %1907 = vmatprep.subr.mxu0 0.0
          %1908 = vmatpush2.msra.mxu0 0.0
          %1909 = vmatprep.subr.mxu0 0.0
          %1910 = vmatpush2.msra.mxu0 0.0
          %1911 = vmatprep.subr.mxu0 0.0
          %1912 = vmatpush2.msra.mxu0 0.0
          %1913 = vmatprep.subr.mxu0 0.0
          %1914 = vmatpush2.msra.mxu0 0.0
          %1915 = vmatprep.subr.mxu0 0.0
          %1916 = vmatpush2.msra.mxu0 0.0
          %1917 = vmatprep.subr.mxu0 0.0
          %1918 = vmatpush2.msra.mxu0 0.0
          %1919 = vmatprep.subr.mxu0 0.0
          %1920 = vmatpush2.msra.mxu0 0.0
          %1921 = vmatprep.subr.mxu0 0.0
          %1922 = vmatpush2.msra.mxu0 0.0
          %1923 = vmatprep.subr.mxu0 0.0
          %1924 = vmatpush2.msra.mxu0 0.0
          %1925 = vmatprep.subr.mxu0 0.0
          %1926 = vmatpush2.msra.mxu0 0.0
          %1927 = vmatprep.subr.mxu0 0.0
          %1928 = vmatpush2.msra.mxu0 0.0
          %1929 = vmatprep.subr.mxu0 0.0
          %1930 = vmatpush2.msra.mxu0 0.0
          %1931 = vmatprep.subr.mxu0 0.0
          %1932 = vmatpush2.msra.mxu0 0.0
          %1933 = vmatprep.subr.mxu0 0.0
          %1934 = vmatpush2.msra.mxu0 0.0
          %1935 = vmatprep.mubr.f32.mxu0 0.0
          %1936 = vmatmul.mubr.f32.gmra.mxu0 %v1869
          %v1937 = vpop.f32.mrf.mxu0
          %v1938 = vadd.f32 0.0, %v1937
          %v1939 = vpop.f32.mrf.mxu0
          %1940 = vdwg.mxu0
          %1941 = vmatprep.subr.mxu0 0.0
          %1942 = vmatpush1.msra.mxu0 %v1795
          %1943 = vmatprep.subr.mxu0 0.0
          %1944 = vmatpush1.msra.mxu0 %v1794
          %1945 = vmatprep.subr.mxu0 0.0
          %1946 = vmatpush1.msra.mxu0 %v1793
          %1947 = vmatprep.subr.mxu0 0.0
          %1948 = vmatpush1.msra.mxu0 %v1792
          %1949 = vmatprep.subr.mxu0 0.0
          %1950 = vmatpush1.msra.mxu0 %v1791
          %1951 = vmatprep.subr.mxu0 0.0
          %1952 = vmatpush1.msra.mxu0 %v1790
          %1953 = vmatprep.subr.mxu0 0.0
          %1954 = vmatpush1.msra.mxu0 %v1789
          %1955 = vmatprep.subr.mxu0 0.0
          %1956 = vmatpush1.msra.mxu0 %v1788
          %1957 = vmatprep.subr.mxu0 0.0
          %1958 = vmatpush1.msra.mxu0 %v1787
          %1959 = vmatprep.subr.mxu0 0.0
          %1960 = vmatpush1.msra.mxu0 %v1786
          %1961 = vmatprep.subr.mxu0 0.0
          %1962 = vmatpush1.msra.mxu0 %v1785
          %1963 = vmatprep.subr.mxu0 0.0
          %1964 = vmatpush1.msra.mxu0 %v1784
          %1965 = vmatprep.subr.mxu0 0.0
          %1966 = vmatpush1.msra.mxu0 %v1783
          %1967 = vmatprep.subr.mxu0 0.0
          %1968 = vmatpush1.msra.mxu0 %v1782
          %1969 = vmatprep.subr.mxu0 0.0
          %1970 = vmatpush1.msra.mxu0 %v1781
          %1971 = vmatprep.subr.mxu0 0.0
          %1972 = vmatpush1.msra.mxu0 %v1780
          %1973 = vmatprep.subr.mxu0 0.0
          %1974 = vmatpush2.msra.mxu0 0.0
          %1975 = vmatprep.subr.mxu0 0.0
          %1976 = vmatpush2.msra.mxu0 0.0
          %1977 = vmatprep.subr.mxu0 0.0
          %1978 = vmatpush2.msra.mxu0 0.0
          %1979 = vmatprep.subr.mxu0 0.0
          %1980 = vmatpush2.msra.mxu0 0.0
          %1981 = vmatprep.subr.mxu0 0.0
          %1982 = vmatpush2.msra.mxu0 0.0
          %1983 = vmatprep.subr.mxu0 0.0
          %1984 = vmatpush2.msra.mxu0 0.0
          %1985 = vmatprep.subr.mxu0 0.0
          %1986 = vmatpush2.msra.mxu0 0.0
          %1987 = vmatprep.subr.mxu0 0.0
          %1988 = vmatpush2.msra.mxu0 0.0
          %1989 = vmatprep.subr.mxu0 0.0
          %1990 = vmatpush2.msra.mxu0 0.0
          %1991 = vmatprep.subr.mxu0 0.0
          %1992 = vmatpush2.msra.mxu0 0.0
          %1993 = vmatprep.subr.mxu0 0.0
          %1994 = vmatpush2.msra.mxu0 0.0
          %1995 = vmatprep.subr.mxu0 0.0
          %1996 = vmatpush2.msra.mxu0 0.0
          %1997 = vmatprep.subr.mxu0 0.0
          %1998 = vmatpush2.msra.mxu0 0.0
          %1999 = vmatprep.subr.mxu0 0.0
          %2000 = vmatpush2.msra.mxu0 0.0
          %2001 = vmatprep.subr.mxu0 0.0
          %2002 = vmatpush2.msra.mxu0 0.0
          %2003 = vmatprep.subr.mxu0 0.0
          %2004 = vmatpush2.msra.mxu0 0.0
          %2005 = vmatprep.mubr.f32.mxu0 0.0
          %2006 = vmatmul.mubr.f32.gmra.mxu0 %v1779
          %v2007 = vpop.f32.mrf.mxu0
          %v2008 = vadd.f32 0.0, %v2007
          %v2009 = vpop.f32.mrf.mxu0
          %2010 = vdwg.mxu0
          %v2012 = vsel %vm419, %v2008, 0
          %2014 = vmatprep.subr.mxu0 0.0
          %2015 = vmatpush1.msra.mxu0 0.0
          %2016 = vmatprep.subr.mxu0 0.0
          %2017 = vmatpush1.msra.mxu0 0.0
          %2018 = vmatprep.subr.mxu0 0.0
          %2019 = vmatpush1.msra.mxu0 0.0
          %2020 = vmatprep.subr.mxu0 0.0
          %2021 = vmatpush1.msra.mxu0 0.0
          %2022 = vmatprep.subr.mxu0 0.0
          %2023 = vmatpush1.msra.mxu0 0.0
          %2024 = vmatprep.subr.mxu0 0.0
          %2025 = vmatpush1.msra.mxu0 0.0
          %2026 = vmatprep.subr.mxu0 0.0
          %2027 = vmatpush1.msra.mxu0 0.0
          %2028 = vmatprep.subr.mxu0 0.0
          %2029 = vmatpush1.msra.mxu0 0.0
          %2030 = vmatprep.subr.mxu0 0.0
          %2031 = vmatpush1.msra.mxu0 0.0
          %2032 = vmatprep.subr.mxu0 0.0
          %2033 = vmatpush1.msra.mxu0 0.0
          %2034 = vmatprep.subr.mxu0 0.0
          %2035 = vmatpush1.msra.mxu0 0.0
          %2036 = vmatprep.subr.mxu0 0.0
          %2037 = vmatpush1.msra.mxu0 0.0
          %2038 = vmatprep.subr.mxu0 0.0
          %2039 = vmatpush1.msra.mxu0 0.0
          %2040 = vmatprep.subr.mxu0 0.0
          %2041 = vmatpush1.msra.mxu0 0.0
          %2042 = vmatprep.subr.mxu0 0.0
          %2043 = vmatpush1.msra.mxu0 %v1867
          %2044 = vmatprep.subr.mxu0 0.0
          %2045 = vmatpush1.msra.mxu0 %v1866
          %2046 = vmatprep.subr.mxu0 0.0
          %2047 = vmatpush2.msra.mxu0 0.0
          %2048 = vmatprep.subr.mxu0 0.0
          %2049 = vmatpush2.msra.mxu0 0.0
          %2050 = vmatprep.subr.mxu0 0.0
          %2051 = vmatpush2.msra.mxu0 0.0
          %2052 = vmatprep.subr.mxu0 0.0
          %2053 = vmatpush2.msra.mxu0 0.0
          %2054 = vmatprep.subr.mxu0 0.0
          %2055 = vmatpush2.msra.mxu0 0.0
          %2056 = vmatprep.subr.mxu0 0.0
          %2057 = vmatpush2.msra.mxu0 0.0
          %2058 = vmatprep.subr.mxu0 0.0
          %2059 = vmatpush2.msra.mxu0 0.0
          %2060 = vmatprep.subr.mxu0 0.0
          %2061 = vmatpush2.msra.mxu0 0.0
          %2062 = vmatprep.subr.mxu0 0.0
          %2063 = vmatpush2.msra.mxu0 0.0
          %2064 = vmatprep.subr.mxu0 0.0
          %2065 = vmatpush2.msra.mxu0 0.0
          %2066 = vmatprep.subr.mxu0 0.0
          %2067 = vmatpush2.msra.mxu0 0.0
          %2068 = vmatprep.subr.mxu0 0.0
          %2069 = vmatpush2.msra.mxu0 0.0
          %2070 = vmatprep.subr.mxu0 0.0
          %2071 = vmatpush2.msra.mxu0 0.0
          %2072 = vmatprep.subr.mxu0 0.0
          %2073 = vmatpush2.msra.mxu0 0.0
          %2074 = vmatprep.subr.mxu0 0.0
          %2075 = vmatpush2.msra.mxu0 0.0
          %2076 = vmatprep.subr.mxu0 0.0
          %2077 = vmatpush2.msra.mxu0 0.0
          %2078 = vmatprep.mubr.f32.mxu0 0.0
          %2079 = vmatmul.mubr.f32.gmra.mxu0 %v2012
          %v2080 = vpop.f32.mrf.mxu0
          %v2081 = vadd.f32 0.0, %v2080
          %v2082 = vpop.f32.mrf.mxu0
          %2083 = vdwg.mxu0
          %v2084 = vmul.f32 %v1938, %v1938
          %v2085 = vsub.f32 %v2081, %v2084
          %v2086 = vmax.f32 %v2085, 0.0
          %v2087 = vadd.f32 %v2086, 1e-05
          %v2088 = vrsqrt.pop %v2087
          %v2089 = vld [vmem:[%s3] sm:$0x1]
          %v2090 = vmul.f32 %v2089, %v2088
          %2091 = vst [vmem:[#allocation4] sm:$0x1] %v2090
          %v2092 = vld [vmem:[%s4] sm:$0x1]
          %v2093 = vsub.f32 %v1770, %v1938
          %v2094 = vmul.f32 %v2093, %v2090
          %v2095 = vadd.f32 %v2092, %v2094
          %2096 = vst [vmem:[#allocation5] sm:$0x1] %v2095
        $region64: #{fused_conv_gn_pool_residual.1} parent=55 // pred_fallthru
          _
      $region56: #{fused_conv_gn_pool_residual.1} parent=51 // pred_fallthru
        _
      %p2097 = scmp.eq.s32.totalorder %s25, 1
      // Predicated region
      $region65: #{fused_conv_gn_pool_residual.1} parent=51 // pred_check
        %p2098 = pneg %p2097
      $region66: #{fused_conv_gn_pool_residual.1} parent=51 // pred_check_branch
        %2100 = sbr.rel (%p2098) target = $region68
      $region67: #{fused_conv_gn_pool_residual.1} parent=51 // pred_region
        %p2101 = scmp.eq.s32.totalorder %s26, 0
        // Predicated region
        $region69: #{fused_conv_gn_pool_residual.1} parent=67 // pred_check
          %p2102 = pneg %p2101
        $region70: #{fused_conv_gn_pool_residual.1} parent=67 // pred_check_branch
          %2104 = sbr.rel (%p2102) target = $region72
        $region71: #{fused_conv_gn_pool_residual.1} parent=67 // pred_region
          %2105 = vst [vmem:[#allocation6] sm:$0xff] -inf
          %2106 = vst [vmem:[#allocation6 + $0x8] sm:$0xff] -inf
        $region72: #{fused_conv_gn_pool_residual.1} parent=67 // pred_fallthru
          _
        %v2107 = vld [vmem:[#allocation6] sm:$0xff]
        %v2108 = vld [vmem:[#allocation6 + $0x8] sm:$0xff]
        %v2109 = vld [vmem:[#allocation4] sm:$0x1]
        %v2111 = vlaneseq
        %v2112 = vshrl.u32 %v2111, 7
        %v2113 = vsub.s32 0, %v2112
        %v2114 = vrot.slane %v2109, %v2113
        %v2116 = vmul.f32 %v1708, %v2114
        %v2117 = vmul.f32 %v1709, %v2114
        %v2118 = vmul.f32 %v1710, %v2114
        %v2119 = vmul.f32 %v1711, %v2114
        %v2120 = vmul.f32 %v1712, %v2114
        %v2121 = vmul.f32 %v1713, %v2114
        %v2122 = vmul.f32 %v1714, %v2114
        %v2123 = vmul.f32 %v1715, %v2114
        %v2124 = vld [vmem:[#allocation5] sm:$0x1]
        %v2126 = vlaneseq
        %v2127 = vshrl.u32 %v2126, 7
        %v2128 = vsub.s32 0, %v2127
        %v2129 = vrot.slane %v2124, %v2128
        %v2131 = vadd.f32 %v2116, %v2129
        %v2132 = vadd.f32 %v2117, %v2129
        %v2133 = vadd.f32 %v2118, %v2129
        %v2134 = vadd.f32 %v2119, %v2129
        %v2135 = vadd.f32 %v2120, %v2129
        %v2136 = vadd.f32 %v2121, %v2129
        %v2137 = vadd.f32 %v2122, %v2129
        %v2138 = vadd.f32 %v2123, %v2129
        %2139 = vst [vmem:[#allocation6] sm:$0xff] %v2137
        %2140 = vst [vmem:[#allocation6 + $0x8] sm:$0xff] %v2138
        %v2141 = vmax.f32 %v2131, %v2133
        %v2142 = vmax.f32 %v2132, %v2134
        %v2143 = vmax.f32 %v2135, %v2137
        %v2144 = vmax.f32 %v2136, %v2138
        %v2145 = vmax.f32 %v2141, %v2107
        %v2146 = vmax.f32 %v2142, %v2108
        %v2147 = vmax.f32 %v2143, %v2133
        %v2148 = vmax.f32 %v2144, %v2134
        %v2149 = vlaneseq
        %v2150 = vshrl.u32 %v2149, 7
        %v2151 = vadd.s32 %v2150, 8
        %vm2152 = vcmp.eq.s32.totalorder %v2150, 0
        %vm2153 = vcmp.eq.s32.totalorder %v2151, 0
        %v2154 = vrot.slane %v2145, 7
        %v2155 = vrot.slane %v2147, 7
        %v2156 = vrot.slane %v2146, 7
        %v2157 = vrot.slane %v2148, 7
        %vm2158 = vcmp.lt.s32.totalorder %v2150, 1
        %v2159 = vsel %vm2158, %v2154, %v2156
        %v2160 = vsel %vm2158, %v2155, %v2157
        %v2161 = vsel %vm2158, %v2156, %v2154
        %v2162 = vsel %vm2158, %v2157, %v2155
        %v2163 = vsel %vm2152, -inf, %v2161
        %v2164 = vsel %vm2153, -inf, %v2159
        %v2165 = vsel %vm2152, -inf, %v2162
        %v2166 = vsel %vm2153, -inf, %v2160
        %v2167 = vrot.slane %v2145, 1
        %v2168 = vrot.slane %v2147, 1
        %v2169 = vrot.slane %v2146, 1
        %v2170 = vrot.slane %v2148, 1
        %vm2171 = vcmp.lt.s32.totalorder %v2150, 7
        %v2172 = vsel %vm2171, %v2167, %v2169
        %v2173 = vsel %vm2171, %v2168, %v2170
        %v2174 = vsel %vm2171, %v2169, %v2167
        %v2175 = vsel %vm2171, %v2170, %v2168
        %v2176 = vmax.f32 %v2163, %v2145
        %v2177 = vmax.f32 %v2164, %v2146
        %v2178 = vmax.f32 %v2165, %v2147
        %v2179 = vmax.f32 %v2166, %v2148
        %v2180 = vmax.f32 %v2176, %v2172
        %v2181 = vmax.f32 %v2177, %v2174
        %v2182 = vmax.f32 %v2178, %v2173
        %v2183 = vmax.f32 %v2179, %v2175
        %2184 = vst [vmem:[#allocation7] sm:$0xff] %v2180
        %2185 = vst [vmem:[#allocation7 + $0x8] sm:$0xff] %v2181
        %2186 = vst [vmem:[#allocation7 + $0x10] sm:$0xff] %v2182
        %2187 = vst [vmem:[#allocation7 + $0x18] sm:$0xff] %v2183
        %v2188 = vld [vmem:[#allocation7] ss:$2 sm:$0xff]
        %s2189 = scalar_lea.vmem [#allocation7], 16
        %v2190 = vld [vmem:[%s2189] ss:$2 sm:$0xff]
        %v2191 = vmax.f32 %v2188, 0.0
        %v2192 = vmax.f32 %v2190, 0.0
        %v2193 = vld [vmem:[%s383] sm:$0xff]
        %v2194 = vld [vmem:[%s383 + $0x8] sm:$0xff]
        %v2195 = vadd.f32 %v2191, %v2193
        %v2196 = vadd.f32 %v2192, %v2194
        %2197 = vst [vmem:[%s395] sm:$0xff] %v2195
        %2198 = vst [vmem:[%s395 + $0x8] sm:$0xff] %v2196
      $region68: #{fused_conv_gn_pool_residual.1} parent=51 // pred_fallthru
        _
      %s2199 = smul.u32 %s26, %s25
      %s2200 = smul.u32 2, %s2199
      %p2201 = scmp.lt.s32.totalorder %s24, 1
      %s2202 = scalar_select %p2201, %s24, 1
      %p2203 = scmp.lt.s32.totalorder %s2200, 7
      %s2204 = scalar_select %p2203, %s2200, 7
      %s2205 = smul.addr %s2202, 8
      %s2206 = sadd.s32 %s2204, %s2205
      %s2207 = smul.addr %s2206, 8
      %s2208 = scalar_lea.vmem %s8, %s2207
      // Predicated region
      $region73: #{fused_conv_gn_pool_residual.1} parent=51 // pred_check
        %p2209 = pneg %p246
      $region74: #{fused_conv_gn_pool_residual.1} parent=51 // pred_check_branch
        %2211 = sbr.rel (%p2209) target = $region76
      $region75: #{fused_conv_gn_pool_residual.1} parent=51 // pred_region
        %s2212 = smul.u32 %s26, %s25
        %s2213 = smul.u32 2, %s2212
      $region76: #{fused_conv_gn_pool_residual.1} parent=51 // pred_fallthru
        _
    $region52: #{fused_conv_gn_pool_residual.1} parent=5 // pred_fallthru
      _
    %p2214 = scmp.le.s32.totalorder 2, %s14
    // Predicated region
    $region77: #{fused_conv_gn_pool_residual.1} parent=5 // pred_check
      %p2215 = pneg %p2214
    $region78: #{fused_conv_gn_pool_residual.1} parent=5 // pred_check_branch
      %2217 = sbr.rel (%p2215) target = $region80
    $region79: #{fused_conv_gn_pool_residual.1} parent=5 // pred_region
      %s2218 = ssub.s32 %s14, 2
      // Predicated region
      $region81: #{fused_conv_gn_pool_residual.1} parent=79 // pred_check
        %p2219 = pneg %p252
      $region82: #{fused_conv_gn_pool_residual.1} parent=79 // pred_check_branch
        %2221 = sbr.rel (%p2219) target = $region84
      $region83: #{fused_conv_gn_pool_residual.1} parent=79 // pred_region
        %s2222 = smul.u32 %s29, %s28
        %s2223 = smul.u32 2, %s2222
        %p2224 = scmp.lt.s32.totalorder %s27, 1
        %s2225 = scalar_select %p2224, %s27, 1
        %p2226 = scmp.lt.s32.totalorder %s2223, 7
        %s2227 = scalar_select %p2226, %s2223, 7
        %s2228 = smul.addr %s2225, 8
        %s2229 = sadd.s32 %s2227, %s2228
        %s2230 = smul.addr %s2229, 8
        %s2231 = scalar_lea.vmem %s8, %s2230
      $region84: #{fused_conv_gn_pool_residual.1} parent=79 // pred_fallthru
        _
    $region80: #{fused_conv_gn_pool_residual.1} parent=5 // pred_fallthru
      _
  $region6: #{fused_conv_gn_pool_residual.1} parent=0 // loop_footer
    %s18 = sadd.s32 1, %s14
  $region7: #{fused_conv_gn_pool_residual.1} parent=0 // loop_footer_branch
    %13 = sbr.rel target = $region3
  $region8: #{fused_conv_gn_pool_residual.1} parent=0 // loop_exit
    _

</llo_original>
